<compile_context>
chip_gen: v7x
topology: tpu7x:2x2x1
jax: 0.10.0
libtpu: 0.0.40
codegen_flags: <defaults>
</compile_context>

<pallas_src>
import functools

import jax
import jax.numpy as jnp
import numpy as np
from jax.experimental import pallas as pl
from jax.experimental.pallas import tpu as pltpu


# --------------------------------------------------------------------------
# Helpers
# --------------------------------------------------------------------------
def _vmem_limit_bytes():
    # Generation-aware VMEM limit: ~3/4 of physical, capped at 96 MiB
    # (128-MiB v5e/v6e -> 96 MiB, 64-MiB v7x -> 48 MiB). Safe fallback 32 MiB.
    try:
        cap = pltpu.get_tpu_info().vmem_capacity_bytes
        return int(min(96 * 1024 * 1024, (cap * 3) // 4))
    except Exception:
        return 32 * 1024 * 1024


# --------------------------------------------------------------------------
# Fully fused kernel: whole module C forward for one image per grid step.
# All activations live in (channels, H*W) layout: channels on sublanes,
# flattened row-major spatial (m = h*W + w) on the 128-lane axis.
# --------------------------------------------------------------------------
def _fused_c_kernel(x_ref, w1_ref, w2a_ref, w13_ref, w31_ref,
                    wc1_ref, wc2_ref, bias_ref, o_ref, *, W, M):
    f32, bf16 = jnp.float32, jnp.bfloat16

    def mm(a, b):
        return jnp.dot(a, b, preferred_element_type=f32)

    def relu(v):
        return jnp.maximum(v, 0.0)

    def shift(v, delta):
        # out[:, m] = v[:, m + delta], zero-filled where m + delta is out of range.
        c = v.shape[0]
        z = jnp.zeros((c, abs(delta)), v.dtype)
        if delta > 0:
            return jnp.concatenate([v[:, delta:], z], axis=1)
        return jnp.concatenate([z, v[:, :M + delta]], axis=1)

    x = x_ref[0]                                    # (Cin, M) f32, kept for residual
    xb = x.astype(bf16)

    # ---- b2 head: 1x1 conv + ReLU ---------------------------------------
    y2 = relu(mm(w2a_ref[...], xb)).astype(bf16)    # (c6, M)

    # ---- (1,3) conv + ReLU: width taps, image-row boundaries masked ------
    w_idx = jax.lax.broadcasted_iota(jnp.int32, (1, M), 1) % W
    y2_l = jnp.where(w_idx >= 1, shift(y2, -1), 0).astype(bf16)      # y2[:, m-1]
    y2_r = jnp.where(w_idx <= W - 2, shift(y2, 1), 0).astype(bf16)   # y2[:, m+1]
    z = mm(w13_ref[0], y2_l) + mm(w13_ref[1], y2) + mm(w13_ref[2], y2_r)
    z = relu(z).astype(bf16)                        # (c7, M)

    # ---- (3,1) conv + ReLU: height taps (shift by W never crosses a row) --
    z_u = shift(z, -W)                              # z[:, m-W], zero on top image row
    z_d = shift(z, W)                               # z[:, m+W], zero on bottom image row
    r2 = relu(mm(w31_ref[0], z_u) + mm(w31_ref[1], z) + mm(w31_ref[2], z_d))
    r2 = r2.astype(bf16)                            # (c8, M); BN2 folded into wc2'

    # ---- b1: 1x1 conv + ReLU (BN1 folded into wc1') -----------------------
    r1 = relu(mm(w1_ref[...], xb)).astype(bf16)     # (c6, M)

    # ---- comb 1x1 (BN + lin_act folded) + residual + final ReLU -----------
    xc = mm(wc1_ref[...], r1) + mm(wc2_ref[...], r2) + bias_ref[...]
    o_ref[0] = relu(x + xc).astype(o_ref.dtype)     # (Cin, M), lane-dense, NCHW-native


# --------------------------------------------------------------------------
# Forward pass (public wrapper: NCHW in, NCHW out, like PyTorch)
# --------------------------------------------------------------------------
def module_c_forward(x_nchw, params, lin_act=0.1):
    bf16 = jnp.bfloat16
    N, Cin, H, W = x_nchw.shape
    M = H * W
    c6 = params["w1"].shape[-1]
    c7 = params["w2b"].shape[-1]
    c8 = params["w2c"].shape[-1]

    # ---- fold / transpose parameters (channels-first kernels, bf16 weights) --
    w1_t = params["w1"][0, 0].T.astype(bf16)                            # (c6, Cin)
    w2a_t = params["w2a"][0, 0].T.astype(bf16)                          # (c6, Cin)
    w13_t = jnp.transpose(params["w2b"][0], (0, 2, 1)).astype(bf16)     # (3, c7, c6)
    w31_t = jnp.transpose(params["w2c"][:, 0], (0, 2, 1)).astype(bf16)  # (3, c8, c7)

    s1, t1 = params["bn1"]
    s2, t2 = params["bn2"]
    wc = params["wc"][0, 0].astype(jnp.float32)                         # (c6+c8, Cin)
    wc1, wc2 = wc[:c6], wc[c6:]
    # BN affine + lin_act folded into the comb conv: one bias column remains.
    wc1p_t = (lin_act * wc1.T * s1[None, :]).astype(bf16)               # (Cin, c6)
    wc2p_t = (lin_act * wc2.T * s2[None, :]).astype(bf16)               # (Cin, c8)
    bias = (lin_act * (t1 @ wc1 + t2 @ wc2)).reshape(Cin, 1).astype(jnp.float32)

    xf = x_nchw.reshape(N, Cin, M).astype(jnp.float32)                  # free reshape

    kern = functools.partial(_fused_c_kernel, W=W, M=M)
    out = pl.pallas_call(
        kern,
        out_shape=jax.ShapeDtypeStruct((N, Cin, M), jnp.float32),
        grid=(N,),
        in_specs=[
            pl.BlockSpec((1, Cin, M), lambda n: (n, 0, 0)),      # x (residual + convs)
            pl.BlockSpec((c6, Cin), lambda n: (0, 0)),           # w1^T
            pl.BlockSpec((c6, Cin), lambda n: (0, 0)),           # w2a^T
            pl.BlockSpec((3, c7, c6), lambda n: (0, 0, 0)),      # (1,3) taps^T
            pl.BlockSpec((3, c8, c7), lambda n: (0, 0, 0)),      # (3,1) taps^T
            pl.BlockSpec((Cin, c6), lambda n: (0, 0)),           # wc1' (BN1+lin_act folded)
            pl.BlockSpec((Cin, c8), lambda n: (0, 0)),           # wc2' (BN2+lin_act folded)
            pl.BlockSpec((Cin, 1), lambda n: (0, 0)),            # folded bias column
        ],
        out_specs=pl.BlockSpec((1, Cin, M), lambda n: (n, 0, 0)),
        compiler_params=pltpu.CompilerParams(
            dimension_semantics=("parallel",),
            vmem_limit_bytes=_vmem_limit_bytes()),
    )(xf, w1_t, w2a_t, w13_t, w31_t, wc1p_t, wc2p_t, bias)

    return out.reshape(N, Cin, H, W)                                    # free reshape


# --------------------------------------------------------------------------
# Params + pure-JAX reference
# --------------------------------------------------------------------------
def init_params(key, in_size, base):
    c6, c7, c8 = 6 * base, 7 * base, 8 * base
    ks = jax.random.split(key, 7)

    def conv_w(k, kh, kw, cin, cout):
        return 0.1 * jax.random.normal(k, (kh, kw, cin, cout), jnp.float32)

    def bn(k, c, eps=0.01):
        k1, k2, k3, k4 = jax.random.split(k, 4)
        gamma = jax.random.uniform(k1, (c,), jnp.float32, 0.5, 1.5)
        beta = 0.1 * jax.random.normal(k2, (c,), jnp.float32)
        rmean = 0.1 * jax.random.normal(k3, (c,), jnp.float32)
        rvar = jax.random.uniform(k4, (c,), jnp.float32, 0.5, 1.5)
        scale = gamma / jnp.sqrt(rvar + eps)
        shift = beta - rmean * scale
        return scale, shift

    return dict(
        w1=conv_w(ks[0], 1, 1, in_size, c6), bn1=bn(ks[1], c6),
        w2a=conv_w(ks[2], 1, 1, in_size, c6),
        w2b=conv_w(ks[3], 1, 3, c6, c7),
        w2c=conv_w(ks[4], 3, 1, c7, c8),
        bn2=bn(ks[5], c8),
        wc=conv_w(ks[6], 1, 1, 14 * base, in_size),
    )


def module_c_reference(x_nchw, params, lin_act=0.1):
    x = jnp.transpose(x_nchw, (0, 2, 3, 1))
    hi = jax.lax.Precision.HIGHEST

    def conv(v, w, pad):
        return jax.lax.conv_general_dilated(
            v, w, window_strides=(1, 1), padding=pad,
            dimension_numbers=("NHWC", "HWIO", "NHWC"), precision=hi)

    relu = lambda v: jnp.maximum(v, 0.0)
    s1, t1 = params["bn1"]
    s2, t2 = params["bn2"]

    b1 = relu(conv(x, params["w1"], [(0, 0), (0, 0)])) * s1 + t1
    y = relu(conv(x, params["w2a"], [(0, 0), (0, 0)]))
    y = relu(conv(y, params["w2b"], [(0, 0), (1, 1)]))
    y = relu(conv(y, params["w2c"], [(1, 1), (0, 0)]))
    b2 = y * s2 + t2

    cat = jnp.concatenate([b1, b2], axis=-1)
    xc = lin_act * conv(cat, params["wc"], [(0, 0), (0, 0)])
    return jnp.transpose(relu(x + xc), (0, 3, 1, 2))


# --------------------------------------------------------------------------
if __name__ == "__main__":
    key = jax.random.PRNGKey(0)
    kx, kp = jax.random.split(key)

    N, Cin, H, W = 2, 4, 16, 16       # NCHW, like the PyTorch module
    base = 4
    lin_act = 0.1

    x = jax.random.normal(kx, (N, Cin, H, W), jnp.float32)
    params = init_params(kp, Cin, base)

    fwd = jax.jit(functools.partial(module_c_forward, lin_act=lin_act))
    out = jax.block_until_ready(fwd(x, params))
    ref = jax.block_until_ready(module_c_reference(x, params, lin_act))

    assert out.shape == (N, Cin, H, W), out.shape
    # bf16 MXU passes + bf16 intermediates + folded bf16 comb weights vs
    # HIGHEST-precision f32 reference.
    np.testing.assert_allclose(np.asarray(out), np.asarray(ref),
                               rtol=1e-2, atol=1e-2)
    print("KERNEL_OK")
</pallas_src>

<mosaic_0001>
module attributes {stable_mosaic.version = 11 : i64} {
  func.func @_fused_c_kernel(%arg0: i32, %arg1: memref<1x4x256xf32, #tpu.memory_space<vmem>>, %arg2: memref<24x4xbf16, #tpu.memory_space<vmem>>, %arg3: memref<24x4xbf16, #tpu.memory_space<vmem>>, %arg4: memref<3x28x24xbf16, #tpu.memory_space<vmem>>, %arg5: memref<3x32x28xbf16, #tpu.memory_space<vmem>>, %arg6: memref<4x24xbf16, #tpu.memory_space<vmem>>, %arg7: memref<4x32xbf16, #tpu.memory_space<vmem>>, %arg8: memref<4x1xf32, #tpu.memory_space<vmem>>, %arg9: memref<1x4x256xf32, #tpu.memory_space<vmem>>) attributes {dimension_semantics = [#tpu.dimension_semantics<parallel>], iteration_bounds = array<i64: 2>, scalar_prefetch = 0 : i64, scratch_operands = 0 : i64, tpu.core_type = #tpu.core_type<tc>, window_params = [{transform_indices = @transform_0, window_bounds = array<i64: 1, 4, 256>}, {pipeline_mode = #tpu.pipeline_mode<synchronous>, transform_indices = @transform_1, window_bounds = array<i64: 24, 4>}, {pipeline_mode = #tpu.pipeline_mode<synchronous>, transform_indices = @transform_2, window_bounds = array<i64: 24, 4>}, {pipeline_mode = #tpu.pipeline_mode<synchronous>, transform_indices = @transform_3, window_bounds = array<i64: 3, 28, 24>}, {pipeline_mode = #tpu.pipeline_mode<synchronous>, transform_indices = @transform_4, window_bounds = array<i64: 3, 32, 28>}, {pipeline_mode = #tpu.pipeline_mode<synchronous>, transform_indices = @transform_5, window_bounds = array<i64: 4, 24>}, {pipeline_mode = #tpu.pipeline_mode<synchronous>, transform_indices = @transform_6, window_bounds = array<i64: 4, 32>}, {pipeline_mode = #tpu.pipeline_mode<synchronous>, transform_indices = @transform_7, window_bounds = array<i64: 4, 1>}, {transform_indices = @transform_8, window_bounds = array<i64: 1, 4, 256>}]} {
    %c0 = arith.constant 0 : index
    %c0_0 = arith.constant 0 : index
    %c0_1 = arith.constant 0 : index
    %0 = vector.load %arg1[%c0, %c0_0, %c0_1] : memref<1x4x256xf32, #tpu.memory_space<vmem>>, vector<1x4x256xf32>
    %1 = vector.shape_cast %0 : vector<1x4x256xf32> to vector<4x256xf32>
    %2 = arith.truncf %1 : vector<4x256xf32> to vector<4x256xbf16>
    %c0_2 = arith.constant 0 : index
    %c0_3 = arith.constant 0 : index
    %3 = vector.load %arg3[%c0_2, %c0_3] : memref<24x4xbf16, #tpu.memory_space<vmem>>, vector<24x4xbf16>
    %cst = arith.constant dense<0.000000e+00> : vector<24x256xf32>
    %4 = tpu.matmul %3, %2, %cst {dimension_numbers = #tpu.dot_dimension_numbers<[1], [0], [0], [1], [0, 0, 1, 1], [], []>} : vector<24x4xbf16>, vector<4x256xbf16>, vector<24x256xf32> -> vector<24x256xf32>
    %cst_4 = arith.constant 0.000000e+00 : f32
    %5 = vector.broadcast %cst_4 : f32 to vector<24x256xf32>
    %6 = arith.maximumf %4, %5 : vector<24x256xf32>
    %7 = arith.truncf %6 : vector<24x256xf32> to vector<24x256xbf16>
    %8 = tpu.iota {dimensions = array<i32: 1>} : vector<1x256xi32>
    %c16_i32 = arith.constant 16 : i32
    %c0_i32 = arith.constant 0 : i32
    %9 = arith.cmpi eq, %c16_i32, %c0_i32 : i32
    %c1_i32 = arith.constant 1 : i32
    %10 = arith.select %9, %c1_i32, %c16_i32 : i32
    %11 = vector.broadcast %10 : i32 to vector<1x256xi32>
    %12 = arith.remsi %8, %11 : vector<1x256xi32>
    %c0_i32_5 = arith.constant 0 : i32
    %13 = vector.broadcast %c0_i32_5 : i32 to vector<1x256xi32>
    %14 = arith.cmpi ne, %12, %13 : vector<1x256xi32>
    %c0_i32_6 = arith.constant 0 : i32
    %15 = vector.broadcast %c0_i32_6 : i32 to vector<1x256xi32>
    %16 = arith.cmpi slt, %12, %15 : vector<1x256xi32>
    %c0_i32_7 = arith.constant 0 : i32
    %17 = arith.cmpi slt, %10, %c0_i32_7 : i32
    %18 = vector.broadcast %17 : i1 to vector<1x256xi1>
    %19 = vector.broadcast %18 : vector<1x256xi1> to vector<1x256xi1>
    %20 = arith.xori %16, %19 : vector<1x256xi1>
    %21 = arith.andi %20, %14 : vector<1x256xi1>
    %22 = vector.broadcast %10 : i32 to vector<1x256xi32>
    %23 = arith.addi %12, %22 : vector<1x256xi32>
    %24 = arith.select %21, %23, %12 : vector<1x256xi1>, vector<1x256xi32>
    %c1_i32_8 = arith.constant 1 : i32
    %25 = vector.broadcast %c1_i32_8 : i32 to vector<1x256xi32>
    %26 = arith.cmpi sge, %24, %25 : vector<1x256xi32>
    %cst_9 = arith.constant 0.000000e+00 : bf16
    %27 = vector.broadcast %cst_9 : bf16 to vector<24x1xbf16>
    %28 = vector.extract_strided_slice %7 {offsets = [0, 0], sizes = [24, 255], strides = [1, 1]} : vector<24x256xbf16> to vector<24x255xbf16>
    %29 = tpu.concatenate %27, %28 in 1 : vector<24x1xbf16>, vector<24x255xbf16> -> vector<24x256xbf16>
    %c0_i32_10 = arith.constant 0 : i32
    %30 = arith.sitofp %c0_i32_10 : i32 to bf16
    %31 = vector.shape_cast %26 : vector<1x256xi1> to vector<1x256xi1>
    %32 = vector.broadcast %31 : vector<1x256xi1> to vector<24x256xi1>
    %33 = vector.broadcast %30 : bf16 to vector<24x256xbf16>
    %34 = arith.select %32, %29, %33 : vector<24x256xi1>, vector<24x256xbf16>
    %c14_i32 = arith.constant 14 : i32
    %35 = vector.broadcast %c14_i32 : i32 to vector<1x256xi32>
    %36 = arith.cmpi sle, %24, %35 : vector<1x256xi32>
    %cst_11 = arith.constant 0.000000e+00 : bf16
    %37 = vector.broadcast %cst_11 : bf16 to vector<24x1xbf16>
    %38 = vector.extract_strided_slice %7 {offsets = [0, 1], sizes = [24, 255], strides = [1, 1]} : vector<24x256xbf16> to vector<24x255xbf16>
    %39 = tpu.concatenate %38, %37 in 1 : vector<24x255xbf16>, vector<24x1xbf16> -> vector<24x256xbf16>
    %c0_i32_12 = arith.constant 0 : i32
    %40 = arith.sitofp %c0_i32_12 : i32 to bf16
    %41 = vector.shape_cast %36 : vector<1x256xi1> to vector<1x256xi1>
    %42 = vector.broadcast %41 : vector<1x256xi1> to vector<24x256xi1>
    %43 = vector.broadcast %40 : bf16 to vector<24x256xbf16>
    %44 = arith.select %42, %39, %43 : vector<24x256xi1>, vector<24x256xbf16>
    %c0_13 = arith.constant 0 : index
    %c0_14 = arith.constant 0 : index
    %c0_15 = arith.constant 0 : index
    %45 = vector.load %arg4[%c0_13, %c0_14, %c0_15] : memref<3x28x24xbf16, #tpu.memory_space<vmem>>, vector<1x28x24xbf16>
    %46 = vector.shape_cast %45 : vector<1x28x24xbf16> to vector<28x24xbf16>
    %cst_16 = arith.constant dense<0.000000e+00> : vector<28x256xf32>
    %47 = tpu.matmul %46, %34, %cst_16 {dimension_numbers = #tpu.dot_dimension_numbers<[1], [0], [0], [1], [0, 0, 1, 1], [], []>} : vector<28x24xbf16>, vector<24x256xbf16>, vector<28x256xf32> -> vector<28x256xf32>
    %c1 = arith.constant 1 : index
    %c0_17 = arith.constant 0 : index
    %c0_18 = arith.constant 0 : index
    %48 = vector.load %arg4[%c1, %c0_17, %c0_18] : memref<3x28x24xbf16, #tpu.memory_space<vmem>>, vector<1x28x24xbf16>
    %49 = vector.shape_cast %48 : vector<1x28x24xbf16> to vector<28x24xbf16>
    %cst_19 = arith.constant dense<0.000000e+00> : vector<28x256xf32>
    %50 = tpu.matmul %49, %7, %cst_19 {dimension_numbers = #tpu.dot_dimension_numbers<[1], [0], [0], [1], [0, 0, 1, 1], [], []>} : vector<28x24xbf16>, vector<24x256xbf16>, vector<28x256xf32> -> vector<28x256xf32>
    %51 = arith.addf %47, %50 : vector<28x256xf32>
    %c2 = arith.constant 2 : index
    %c0_20 = arith.constant 0 : index
    %c0_21 = arith.constant 0 : index
    %52 = vector.load %arg4[%c2, %c0_20, %c0_21] : memref<3x28x24xbf16, #tpu.memory_space<vmem>>, vector<1x28x24xbf16>
    %53 = vector.shape_cast %52 : vector<1x28x24xbf16> to vector<28x24xbf16>
    %cst_22 = arith.constant dense<0.000000e+00> : vector<28x256xf32>
    %54 = tpu.matmul %53, %44, %cst_22 {dimension_numbers = #tpu.dot_dimension_numbers<[1], [0], [0], [1], [0, 0, 1, 1], [], []>} : vector<28x24xbf16>, vector<24x256xbf16>, vector<28x256xf32> -> vector<28x256xf32>
    %55 = arith.addf %51, %54 : vector<28x256xf32>
    %cst_23 = arith.constant 0.000000e+00 : f32
    %56 = vector.broadcast %cst_23 : f32 to vector<28x256xf32>
    %57 = arith.maximumf %55, %56 : vector<28x256xf32>
    %58 = arith.truncf %57 : vector<28x256xf32> to vector<28x256xbf16>
    %cst_24 = arith.constant 0.000000e+00 : bf16
    %59 = vector.broadcast %cst_24 : bf16 to vector<28x16xbf16>
    %60 = vector.extract_strided_slice %58 {offsets = [0, 0], sizes = [28, 240], strides = [1, 1]} : vector<28x256xbf16> to vector<28x240xbf16>
    %61 = tpu.concatenate %59, %60 in 1 : vector<28x16xbf16>, vector<28x240xbf16> -> vector<28x256xbf16>
    %cst_25 = arith.constant 0.000000e+00 : bf16
    %62 = vector.broadcast %cst_25 : bf16 to vector<28x16xbf16>
    %63 = vector.extract_strided_slice %58 {offsets = [0, 16], sizes = [28, 240], strides = [1, 1]} : vector<28x256xbf16> to vector<28x240xbf16>
    %64 = tpu.concatenate %63, %62 in 1 : vector<28x240xbf16>, vector<28x16xbf16> -> vector<28x256xbf16>
    %c0_26 = arith.constant 0 : index
    %c0_27 = arith.constant 0 : index
    %c0_28 = arith.constant 0 : index
    %65 = vector.load %arg5[%c0_26, %c0_27, %c0_28] : memref<3x32x28xbf16, #tpu.memory_space<vmem>>, vector<1x32x28xbf16>
    %66 = vector.shape_cast %65 : vector<1x32x28xbf16> to vector<32x28xbf16>
    %cst_29 = arith.constant dense<0.000000e+00> : vector<32x256xf32>
    %67 = tpu.matmul %66, %61, %cst_29 {dimension_numbers = #tpu.dot_dimension_numbers<[1], [0], [0], [1], [0, 0, 1, 1], [], []>} : vector<32x28xbf16>, vector<28x256xbf16>, vector<32x256xf32> -> vector<32x256xf32>
    %c1_30 = arith.constant 1 : index
    %c0_31 = arith.constant 0 : index
    %c0_32 = arith.constant 0 : index
    %68 = vector.load %arg5[%c1_30, %c0_31, %c0_32] : memref<3x32x28xbf16, #tpu.memory_space<vmem>>, vector<1x32x28xbf16>
    %69 = vector.shape_cast %68 : vector<1x32x28xbf16> to vector<32x28xbf16>
    %cst_33 = arith.constant dense<0.000000e+00> : vector<32x256xf32>
    %70 = tpu.matmul %69, %58, %cst_33 {dimension_numbers = #tpu.dot_dimension_numbers<[1], [0], [0], [1], [0, 0, 1, 1], [], []>} : vector<32x28xbf16>, vector<28x256xbf16>, vector<32x256xf32> -> vector<32x256xf32>
    %71 = arith.addf %67, %70 : vector<32x256xf32>
    %c2_34 = arith.constant 2 : index
    %c0_35 = arith.constant 0 : index
    %c0_36 = arith.constant 0 : index
    %72 = vector.load %arg5[%c2_34, %c0_35, %c0_36] : memref<3x32x28xbf16, #tpu.memory_space<vmem>>, vector<1x32x28xbf16>
    %73 = vector.shape_cast %72 : vector<1x32x28xbf16> to vector<32x28xbf16>
    %cst_37 = arith.constant dense<0.000000e+00> : vector<32x256xf32>
    %74 = tpu.matmul %73, %64, %cst_37 {dimension_numbers = #tpu.dot_dimension_numbers<[1], [0], [0], [1], [0, 0, 1, 1], [], []>} : vector<32x28xbf16>, vector<28x256xbf16>, vector<32x256xf32> -> vector<32x256xf32>
    %75 = arith.addf %71, %74 : vector<32x256xf32>
    %cst_38 = arith.constant 0.000000e+00 : f32
    %76 = vector.broadcast %cst_38 : f32 to vector<32x256xf32>
    %77 = arith.maximumf %75, %76 : vector<32x256xf32>
    %78 = arith.truncf %77 : vector<32x256xf32> to vector<32x256xbf16>
    %c0_39 = arith.constant 0 : index
    %c0_40 = arith.constant 0 : index
    %79 = vector.load %arg2[%c0_39, %c0_40] : memref<24x4xbf16, #tpu.memory_space<vmem>>, vector<24x4xbf16>
    %cst_41 = arith.constant dense<0.000000e+00> : vector<24x256xf32>
    %80 = tpu.matmul %79, %2, %cst_41 {dimension_numbers = #tpu.dot_dimension_numbers<[1], [0], [0], [1], [0, 0, 1, 1], [], []>} : vector<24x4xbf16>, vector<4x256xbf16>, vector<24x256xf32> -> vector<24x256xf32>
    %cst_42 = arith.constant 0.000000e+00 : f32
    %81 = vector.broadcast %cst_42 : f32 to vector<24x256xf32>
    %82 = arith.maximumf %80, %81 : vector<24x256xf32>
    %83 = arith.truncf %82 : vector<24x256xf32> to vector<24x256xbf16>
    %c0_43 = arith.constant 0 : index
    %c0_44 = arith.constant 0 : index
    %84 = vector.load %arg6[%c0_43, %c0_44] : memref<4x24xbf16, #tpu.memory_space<vmem>>, vector<4x24xbf16>
    %cst_45 = arith.constant dense<0.000000e+00> : vector<4x256xf32>
    %85 = tpu.matmul %84, %83, %cst_45 {dimension_numbers = #tpu.dot_dimension_numbers<[1], [0], [0], [1], [0, 0, 1, 1], [], []>} : vector<4x24xbf16>, vector<24x256xbf16>, vector<4x256xf32> -> vector<4x256xf32>
    %c0_46 = arith.constant 0 : index
    %c0_47 = arith.constant 0 : index
    %86 = vector.load %arg7[%c0_46, %c0_47] : memref<4x32xbf16, #tpu.memory_space<vmem>>, vector<4x32xbf16>
    %cst_48 = arith.constant dense<0.000000e+00> : vector<4x256xf32>
    %87 = tpu.matmul %86, %78, %cst_48 {dimension_numbers = #tpu.dot_dimension_numbers<[1], [0], [0], [1], [0, 0, 1, 1], [], []>} : vector<4x32xbf16>, vector<32x256xbf16>, vector<4x256xf32> -> vector<4x256xf32>
    %88 = arith.addf %85, %87 : vector<4x256xf32>
    %c0_49 = arith.constant 0 : index
    %c0_50 = arith.constant 0 : index
    %89 = vector.load %arg8[%c0_49, %c0_50] : memref<4x1xf32, #tpu.memory_space<vmem>>, vector<4x1xf32>
    %90 = vector.broadcast %89 : vector<4x1xf32> to vector<4x256xf32>
    %91 = arith.addf %88, %90 : vector<4x256xf32>
    %92 = arith.addf %1, %91 : vector<4x256xf32>
    %cst_51 = arith.constant 0.000000e+00 : f32
    %93 = vector.broadcast %cst_51 : f32 to vector<4x256xf32>
    %94 = arith.maximumf %92, %93 : vector<4x256xf32>
    %c0_52 = arith.constant 0 : index
    %c0_53 = arith.constant 0 : index
    %c0_54 = arith.constant 0 : index
    %95 = vector.load %arg9[%c0_52, %c0_53, %c0_54] : memref<1x4x256xf32, #tpu.memory_space<vmem>>, vector<1x4x256xf32>
    %96 = vector.shape_cast %95 : vector<1x4x256xf32> to vector<4x256xf32>
    %97 = vector.shape_cast %94 : vector<4x256xf32> to vector<1x4x256xf32>
    tpu.vector_store %arg9[%c0_52, %c0_53, %c0_54], %97 {strides = array<i32>} : memref<1x4x256xf32, #tpu.memory_space<vmem>>, vector<1x4x256xf32>,
    return
  }
  func.func @transform_0(%arg0: i32) -> (i32, i32, i32) {
    %c0_i32 = arith.constant 0 : i32
    %c0_i32_0 = arith.constant 0 : i32
    %c0_i32_1 = arith.constant 0 : i32
    return %arg0, %c0_i32, %c0_i32_0 : i32, i32, i32
  }
  func.func @transform_1(%arg0: i32) -> (i32, i32) {
    %c0_i32 = arith.constant 0 : i32
    %c0_i32_0 = arith.constant 0 : i32
    %c0_i32_1 = arith.constant 0 : i32
    return %c0_i32, %c0_i32_0 : i32, i32
  }
  func.func @transform_2(%arg0: i32) -> (i32, i32) {
    %c0_i32 = arith.constant 0 : i32
    %c0_i32_0 = arith.constant 0 : i32
    %c0_i32_1 = arith.constant 0 : i32
    return %c0_i32, %c0_i32_0 : i32, i32
  }
  func.func @transform_3(%arg0: i32) -> (i32, i32, i32) {
    %c0_i32 = arith.constant 0 : i32
    %c0_i32_0 = arith.constant 0 : i32
    %c0_i32_1 = arith.constant 0 : i32
    %c0_i32_2 = arith.constant 0 : i32
    return %c0_i32, %c0_i32_0, %c0_i32_1 : i32, i32, i32
  }
  func.func @transform_4(%arg0: i32) -> (i32, i32, i32) {
    %c0_i32 = arith.constant 0 : i32
    %c0_i32_0 = arith.constant 0 : i32
    %c0_i32_1 = arith.constant 0 : i32
    %c0_i32_2 = arith.constant 0 : i32
    return %c0_i32, %c0_i32_0, %c0_i32_1 : i32, i32, i32
  }
  func.func @transform_5(%arg0: i32) -> (i32, i32) {
    %c0_i32 = arith.constant 0 : i32
    %c0_i32_0 = arith.constant 0 : i32
    %c0_i32_1 = arith.constant 0 : i32
    return %c0_i32, %c0_i32_0 : i32, i32
  }
  func.func @transform_6(%arg0: i32) -> (i32, i32) {
    %c0_i32 = arith.constant 0 : i32
    %c0_i32_0 = arith.constant 0 : i32
    %c0_i32_1 = arith.constant 0 : i32
    return %c0_i32, %c0_i32_0 : i32, i32
  }
  func.func @transform_7(%arg0: i32) -> (i32, i32) {
    %c0_i32 = arith.constant 0 : i32
    %c0_i32_0 = arith.constant 0 : i32
    %c0_i32_1 = arith.constant 0 : i32
    return %c0_i32, %c0_i32_0 : i32, i32
  }
  func.func @transform_8(%arg0: i32) -> (i32, i32, i32) {
    %c0_i32 = arith.constant 0 : i32
    %c0_i32_0 = arith.constant 0 : i32
    %c0_i32_1 = arith.constant 0 : i32
    return %arg0, %c0_i32, %c0_i32_0 : i32, i32, i32
  }
}

</mosaic_0001>

<llo_original>
// kernel: module_c_forward.1
$region0: #{module_c_forward.1}
  #allocation0 [shape = 'u32[]', space=smem, size = 0x4, offset = 0x4, fixed_abs, tag = 'smem constant byte address 0x4 - core index']
  #allocation1 [shape = 'u32[144,128]{1,0:T(1,128)}', space=vmem, size = 0x12000, scoped, tag = 'internal scratch']
  %s0 = inlined_call_operand.vmem [shape: f32[2,4,256], index: 0, kind: input, shape index: {}]
  %s1 = inlined_call_operand.vmem [shape: bf16[24,4], index: 1, kind: input, shape index: {}]
  %s2 = inlined_call_operand.vmem [shape: bf16[24,4], index: 2, kind: input, shape index: {}]
  %s3 = inlined_call_operand.vmem [shape: bf16[3,28,24], index: 3, kind: input, shape index: {}]
  %s4 = inlined_call_operand.vmem [shape: bf16[3,32,28], index: 4, kind: input, shape index: {}]
  %s5 = inlined_call_operand.vmem [shape: bf16[4,24], index: 5, kind: input, shape index: {}]
  %s6 = inlined_call_operand.vmem [shape: bf16[4,32], index: 6, kind: input, shape index: {}]
  %s7 = inlined_call_operand.vmem [shape: f32[4,1], index: 7, kind: input, shape index: {}]
  %s8 = inlined_call_operand.vmem [shape: f32[2,4,256], index: 8, kind: output, shape index: {}]
  %s9 = sld [smem:[#allocation0]]
  $region65: #{module_c_forward.1} parent=0
    _
  %s11 = ssub.s32 1, %s9
  %s12 = scalar_select 0, %s11, %s9
  loop: start=0, step=1, limit=4
  $region2: #{module_c_forward.1} parent=0 // loop_pre_header
    _
  $region3: #{module_c_forward.1} parent=0 // loop_header
    %s14 = sphi 0, %s18
    %p15 = scmp.ge.s32.totalorder %s14, 4
    %s24 = sphi 0, %s26
    %s27 = sphi 0, %s24
    %s28 = sphi 0, %s27
    %s44 = sphi 0, %s28
    %s48 = sphi 0, %s48
    %s50 = sphi 0, %s48
    %s51 = sphi 0, %s50
    %s65 = sphi 0, %s51
    %s69 = sphi 0, %s69
    %s71 = sphi 0, %s69
    %s72 = sphi 0, %s71
    %s86 = sphi 0, %s72
    %s90 = sphi 0, %s90
    %s92 = sphi 0, %s90
    %s93 = sphi 0, %s92
    %s107 = sphi 0, %s93
    %s111 = sphi 0, %s111
    %s113 = sphi 0, %s111
    %s114 = sphi 0, %s113
    %s128 = sphi 0, %s114
    %s132 = sphi 0, %s132
    %s134 = sphi 0, %s132
    %s135 = sphi 0, %s134
    %s149 = sphi 0, %s135
    %s153 = sphi 0, %s153
    %s155 = sphi 0, %s153
    %s156 = sphi 0, %s155
    %s170 = sphi 0, %s156
    %s174 = sphi 0, %s174
    %s176 = sphi 0, %s174
    %s177 = sphi 0, %s176
    %s191 = sphi 0, %s177
    %s197 = sphi 0, %s199
    %s200 = sphi 0, %s197
    %s201 = sphi 0, %s200
    %s217 = sphi 0, %s201
  $region4: #{module_c_forward.1} parent=0 // loop_header_branch
    %17 = sbr.rel (%p15) target = $region8
  $region5: #{module_c_forward.1} parent=0 // loop_body
    %s19 = ssub.s32 %s14, 1
    %s20 = ssub.s32 %s14, 2
    %s21 = sadd.s32 %s14, 1
    %s22 = ssub.s32 %s14, %s21
    %p23 = scmp.eq.s32.totalorder %s22, 0
    %s25 = sadd.s32 %s24, 1
    %s26 = scalar_select %p23, %s24, %s25
    %p29 = pneg %p23
    %p30 = scmp.eq.s32.totalorder %s14, 1
    %p31 = por %p29, %p30
    %p32 = scmp.ne.s32.totalorder %s24, %s27
    %p33 = scmp.eq.s32.totalorder %s14, 0
    %p34 = por %p32, %p33
    %p35 = scmp.ne.s32.totalorder %s24, %s27
    %p36 = scmp.eq.s32.totalorder %s19, 1
    %p37 = por %p35, %p36
    %p38 = scmp.ne.s32.totalorder %s27, %s28
    %p39 = scmp.eq.s32.totalorder %s19, 0
    %p40 = por %p38, %p39
    %p41 = scmp.ne.s32.totalorder %s27, %s28
    %p42 = scmp.eq.s32.totalorder %s20, 1
    %p43 = por %p41, %p42
    %p45 = scmp.ne.s32.totalorder %s28, %s44
    %p46 = scmp.eq.s32.totalorder %s20, 0
    %p47 = por %p45, %p46
    %s49 = sadd.s32 %s48, 1
    %p52 = scmp.eq.s32.totalorder %s14, 1
    %p53 = scmp.ne.s32.totalorder %s48, %s50
    %p54 = scmp.eq.s32.totalorder %s14, 0
    %p55 = por %p53, %p54
    %p56 = scmp.ne.s32.totalorder %s48, %s50
    %p57 = scmp.eq.s32.totalorder %s19, 1
    %p58 = por %p56, %p57
    %p59 = scmp.ne.s32.totalorder %s50, %s51
    %p60 = scmp.eq.s32.totalorder %s19, 0
    %p61 = por %p59, %p60
    %p62 = scmp.ne.s32.totalorder %s50, %s51
    %p63 = scmp.eq.s32.totalorder %s20, 1
    %p64 = por %p62, %p63
    %p66 = scmp.ne.s32.totalorder %s51, %s65
    %p67 = scmp.eq.s32.totalorder %s20, 0
    %p68 = por %p66, %p67
    %s70 = sadd.s32 %s69, 1
    %p73 = scmp.eq.s32.totalorder %s14, 1
    %p74 = scmp.ne.s32.totalorder %s69, %s71
    %p75 = scmp.eq.s32.totalorder %s14, 0
    %p76 = por %p74, %p75
    %p77 = scmp.ne.s32.totalorder %s69, %s71
    %p78 = scmp.eq.s32.totalorder %s19, 1
    %p79 = por %p77, %p78
    %p80 = scmp.ne.s32.totalorder %s71, %s72
    %p81 = scmp.eq.s32.totalorder %s19, 0
    %p82 = por %p80, %p81
    %p83 = scmp.ne.s32.totalorder %s71, %s72
    %p84 = scmp.eq.s32.totalorder %s20, 1
    %p85 = por %p83, %p84
    %p87 = scmp.ne.s32.totalorder %s72, %s86
    %p88 = scmp.eq.s32.totalorder %s20, 0
    %p89 = por %p87, %p88
    %s91 = sadd.s32 %s90, 1
    %p94 = scmp.eq.s32.totalorder %s14, 1
    %p95 = scmp.ne.s32.totalorder %s90, %s92
    %p96 = scmp.eq.s32.totalorder %s14, 0
    %p97 = por %p95, %p96
    %p98 = scmp.ne.s32.totalorder %s90, %s92
    %p99 = scmp.eq.s32.totalorder %s19, 1
    %p100 = por %p98, %p99
    %p101 = scmp.ne.s32.totalorder %s92, %s93
    %p102 = scmp.eq.s32.totalorder %s19, 0
    %p103 = por %p101, %p102
    %p104 = scmp.ne.s32.totalorder %s92, %s93
    %p105 = scmp.eq.s32.totalorder %s20, 1
    %p106 = por %p104, %p105
    %p108 = scmp.ne.s32.totalorder %s93, %s107
    %p109 = scmp.eq.s32.totalorder %s20, 0
    %p110 = por %p108, %p109
    %s112 = sadd.s32 %s111, 1
    %p115 = scmp.eq.s32.totalorder %s14, 1
    %p116 = scmp.ne.s32.totalorder %s111, %s113
    %p117 = scmp.eq.s32.totalorder %s14, 0
    %p118 = por %p116, %p117
    %p119 = scmp.ne.s32.totalorder %s111, %s113
    %p120 = scmp.eq.s32.totalorder %s19, 1
    %p121 = por %p119, %p120
    %p122 = scmp.ne.s32.totalorder %s113, %s114
    %p123 = scmp.eq.s32.totalorder %s19, 0
    %p124 = por %p122, %p123
    %p125 = scmp.ne.s32.totalorder %s113, %s114
    %p126 = scmp.eq.s32.totalorder %s20, 1
    %p127 = por %p125, %p126
    %p129 = scmp.ne.s32.totalorder %s114, %s128
    %p130 = scmp.eq.s32.totalorder %s20, 0
    %p131 = por %p129, %p130
    %s133 = sadd.s32 %s132, 1
    %p136 = scmp.eq.s32.totalorder %s14, 1
    %p137 = scmp.ne.s32.totalorder %s132, %s134
    %p138 = scmp.eq.s32.totalorder %s14, 0
    %p139 = por %p137, %p138
    %p140 = scmp.ne.s32.totalorder %s132, %s134
    %p141 = scmp.eq.s32.totalorder %s19, 1
    %p142 = por %p140, %p141
    %p143 = scmp.ne.s32.totalorder %s134, %s135
    %p144 = scmp.eq.s32.totalorder %s19, 0
    %p145 = por %p143, %p144
    %p146 = scmp.ne.s32.totalorder %s134, %s135
    %p147 = scmp.eq.s32.totalorder %s20, 1
    %p148 = por %p146, %p147
    %p150 = scmp.ne.s32.totalorder %s135, %s149
    %p151 = scmp.eq.s32.totalorder %s20, 0
    %p152 = por %p150, %p151
    %s154 = sadd.s32 %s153, 1
    %p157 = scmp.eq.s32.totalorder %s14, 1
    %p158 = scmp.ne.s32.totalorder %s153, %s155
    %p159 = scmp.eq.s32.totalorder %s14, 0
    %p160 = por %p158, %p159
    %p161 = scmp.ne.s32.totalorder %s153, %s155
    %p162 = scmp.eq.s32.totalorder %s19, 1
    %p163 = por %p161, %p162
    %p164 = scmp.ne.s32.totalorder %s155, %s156
    %p165 = scmp.eq.s32.totalorder %s19, 0
    %p166 = por %p164, %p165
    %p167 = scmp.ne.s32.totalorder %s155, %s156
    %p168 = scmp.eq.s32.totalorder %s20, 1
    %p169 = por %p167, %p168
    %p171 = scmp.ne.s32.totalorder %s156, %s170
    %p172 = scmp.eq.s32.totalorder %s20, 0
    %p173 = por %p171, %p172
    %s175 = sadd.s32 %s174, 1
    %p178 = scmp.eq.s32.totalorder %s14, 1
    %p179 = scmp.ne.s32.totalorder %s174, %s176
    %p180 = scmp.eq.s32.totalorder %s14, 0
    %p181 = por %p179, %p180
    %p182 = scmp.ne.s32.totalorder %s174, %s176
    %p183 = scmp.eq.s32.totalorder %s19, 1
    %p184 = por %p182, %p183
    %p185 = scmp.ne.s32.totalorder %s176, %s177
    %p186 = scmp.eq.s32.totalorder %s19, 0
    %p187 = por %p185, %p186
    %p188 = scmp.ne.s32.totalorder %s176, %s177
    %p189 = scmp.eq.s32.totalorder %s20, 1
    %p190 = por %p188, %p189
    %p192 = scmp.ne.s32.totalorder %s177, %s191
    %p193 = scmp.eq.s32.totalorder %s20, 0
    %p194 = por %p192, %p193
    %s195 = ssub.s32 %s14, %s21
    %p196 = scmp.eq.s32.totalorder %s195, 0
    %s198 = sadd.s32 %s197, 1
    %s199 = scalar_select %p196, %s197, %s198
    %p202 = pneg %p196
    %p203 = scmp.eq.s32.totalorder %s14, 1
    %p204 = por %p202, %p203
    %p205 = scmp.ne.s32.totalorder %s197, %s200
    %p206 = scmp.eq.s32.totalorder %s14, 0
    %p207 = por %p205, %p206
    %p208 = scmp.ne.s32.totalorder %s197, %s200
    %p209 = scmp.eq.s32.totalorder %s19, 1
    %p210 = por %p208, %p209
    %p211 = scmp.ne.s32.totalorder %s200, %s201
    %p212 = scmp.eq.s32.totalorder %s19, 0
    %p213 = por %p211, %p212
    %p214 = scmp.ne.s32.totalorder %s200, %s201
    %p215 = scmp.eq.s32.totalorder %s20, 1
    %p216 = por %p214, %p215
    %p218 = scmp.ne.s32.totalorder %s201, %s217
    %p219 = scmp.eq.s32.totalorder %s20, 0
    %p220 = por %p218, %p219
    %p221 = scmp.le.s32.totalorder 1, %s14
    %p222 = scmp.lt.s32.totalorder %s14, 3
    %p223 = pnand %p221, %p222
    %p224 = pneg %p223
    // Predicated region
    $region9: #{module_c_forward.1} parent=5 // pred_check
      _
    $region10: #{module_c_forward.1} parent=5 // pred_check_branch
      %226 = sbr.rel (%p223) target = $region12
    $region11: #{module_c_forward.1} parent=5 // pred_region
      %s227 = ssub.s32 %s14, 1
      // Predicated region
      $region13: #{module_c_forward.1} parent=11 // pred_check
        %p228 = pneg %p61
      $region14: #{module_c_forward.1} parent=11 // pred_check_branch
        %230 = sbr.rel (%p228) target = $region16
      $region15: #{module_c_forward.1} parent=11 // pred_region
        _
      $region16: #{module_c_forward.1} parent=11 // pred_fallthru
        _
      // Predicated region
      $region17: #{module_c_forward.1} parent=11 // pred_check
        %p231 = pneg %p82
      $region18: #{module_c_forward.1} parent=11 // pred_check_branch
        %233 = sbr.rel (%p231) target = $region20
      $region19: #{module_c_forward.1} parent=11 // pred_region
        _
      $region20: #{module_c_forward.1} parent=11 // pred_fallthru
        _
      // Predicated region
      $region21: #{module_c_forward.1} parent=11 // pred_check
        %p234 = pneg %p103
      $region22: #{module_c_forward.1} parent=11 // pred_check_branch
        %236 = sbr.rel (%p234) target = $region24
      $region23: #{module_c_forward.1} parent=11 // pred_region
        _
      $region24: #{module_c_forward.1} parent=11 // pred_fallthru
        _
      // Predicated region
      $region25: #{module_c_forward.1} parent=11 // pred_check
        %p237 = pneg %p124
      $region26: #{module_c_forward.1} parent=11 // pred_check_branch
        %239 = sbr.rel (%p237) target = $region28
      $region27: #{module_c_forward.1} parent=11 // pred_region
        _
      $region28: #{module_c_forward.1} parent=11 // pred_fallthru
        _
      // Predicated region
      $region29: #{module_c_forward.1} parent=11 // pred_check
        %p240 = pneg %p145
      $region30: #{module_c_forward.1} parent=11 // pred_check_branch
        %242 = sbr.rel (%p240) target = $region32
      $region31: #{module_c_forward.1} parent=11 // pred_region
        _
      $region32: #{module_c_forward.1} parent=11 // pred_fallthru
        _
      // Predicated region
      $region33: #{module_c_forward.1} parent=11 // pred_check
        %p243 = pneg %p166
      $region34: #{module_c_forward.1} parent=11 // pred_check_branch
        %245 = sbr.rel (%p243) target = $region36
      $region35: #{module_c_forward.1} parent=11 // pred_region
        _
      $region36: #{module_c_forward.1} parent=11 // pred_fallthru
        _
      // Predicated region
      $region37: #{module_c_forward.1} parent=11 // pred_check
        %p246 = pneg %p187
      $region38: #{module_c_forward.1} parent=11 // pred_check_branch
        %248 = sbr.rel (%p246) target = $region40
      $region39: #{module_c_forward.1} parent=11 // pred_region
        _
      $region40: #{module_c_forward.1} parent=11 // pred_fallthru
        _
    $region12: #{module_c_forward.1} parent=5 // pred_fallthru
      _
    %p249 = scmp.lt.s32.totalorder %s14, 2
    // Predicated region
    $region41: #{module_c_forward.1} parent=5 // pred_check
      %p250 = pneg %p249
    $region42: #{module_c_forward.1} parent=5 // pred_check_branch
      %252 = sbr.rel (%p250) target = $region44
    $region43: #{module_c_forward.1} parent=5 // pred_region
      // Predicated region
      $region45: #{module_c_forward.1} parent=43 // pred_check
        %p253 = pneg %p34
      $region46: #{module_c_forward.1} parent=43 // pred_check_branch
        %255 = sbr.rel (%p253) target = $region48
      $region47: #{module_c_forward.1} parent=43 // pred_region
        %p256 = scmp.lt.s32.totalorder %s14, 1
        %s257 = scalar_select %p256, %s14, 1
        %s258 = smul.addr %s257, 2
        %s259 = smul.addr %s258, 4
        %s260 = scalar_lea.vmem %s0, %s259
      $region48: #{module_c_forward.1} parent=43 // pred_fallthru
        _
    $region44: #{module_c_forward.1} parent=5 // pred_fallthru
      _
    %p261 = scmp.le.s32.totalorder 1, %s14
    %p262 = scmp.lt.s32.totalorder %s14, 3
    %p263 = pnand %p261, %p262
    %p264 = pneg %p263
    // Predicated region
    $region49: #{module_c_forward.1} parent=5 // pred_check
      _
    $region50: #{module_c_forward.1} parent=5 // pred_check_branch
      %266 = sbr.rel (%p263) target = $region52
    $region51: #{module_c_forward.1} parent=5 // pred_region
      %s267 = ssub.s32 %s14, 1
      %p268 = scmp.lt.s32.totalorder %s19, 1
      %s269 = scalar_select %p268, %s19, 1
      %s270 = smul.addr %s269, 2
      %s271 = smul.addr %s270, 4
      %s272 = scalar_lea.vmem %s0, %s271
      %p273 = pneg %p40
      %p274 = pneg %p37
      %p275 = pneg %p61
      %p276 = pneg %p58
      %p277 = pneg %p82
      %p278 = pneg %p79
      %p279 = pneg %p103
      %p280 = pneg %p100
      %p281 = pneg %p124
      %p282 = pneg %p121
      %p283 = pneg %p145
      %p284 = pneg %p142
      %p285 = pneg %p166
      %p286 = pneg %p163
      %p287 = pneg %p187
      %p288 = pneg %p184
      %p289 = pneg %p213
      %p290 = pneg %p210
      %p291 = scmp.lt.s32.totalorder %s19, 1
      %s292 = scalar_select %p291, %s19, 1
      %s293 = smul.addr %s292, 2
      %s294 = smul.addr %s293, 4
      %s295 = scalar_lea.vmem %s8, %s294
      %p296 = scmp.lt.s32.totalorder %s19, 1
      %s297 = scalar_select %p296, %s19, 1
      %s298 = smul.addr %s297, 2
      %s299 = smul.addr %s298, 4
      %s300 = scalar_lea.vmem %s0, %s299
      %p301 = scmp.lt.s32.totalorder %s19, 1
      %s302 = scalar_select %p301, %s19, 1
      %s303 = smul.addr %s302, 2
      %s304 = smul.addr %s303, 4
      %s305 = scalar_lea.vmem %s8, %s304
      %v309 = vld [vmem:[%s300] sm:$0xff]
      %v311 = vcombine.high %v309, %v309
      %v313 = vpack.c.bf16 %v309, %v309
      %v314 = vpack.c.bf16 %v311, %v311
      %v315 = vld [vmem:[%s2] sm:$0xf]
      %v316 = vld [vmem:[%s2 + $0x4] sm:$0xf]
      %v317 = vld [vmem:[%s2 + $0x8] sm:$0xf]
      %v321 = vunpack.c.l.b16 %v315
      %v322 = vunpack.c.l.b16 %v316
      %v323 = vunpack.c.l.b16 %v317
      %v324 = vpack.c.b16 %v322, %v321
      %v325 = vpack.c.b16 %v323, %v323
      %vm326 = vcmask 31744
      %v328 = vsel %vm326, %v324, 0
      %v331 = vsel %vm326, %v325, 0
      %vm333 = vcmask 1041408
      %v335 = vsel %vm333, %v313, 0
      %v338 = vsel %vm333, %v314, 0
      %340 = vmatprep.subr.bf16.mxu0 %v338
      %341 = vmatpush1.bf16.msra.mxu0 %v335
      %342 = vmatprep.subr.bf16.mxu0 0
      %343 = vmatpush1.bf16.msra.mxu0 0
      %344 = vmatprep.subr.bf16.mxu0 0
      %345 = vmatpush1.bf16.msra.mxu0 0
      %346 = vmatprep.subr.bf16.mxu0 0
      %347 = vmatpush1.bf16.msra.mxu0 0
      %348 = vmatprep.subr.bf16.mxu0 0
      %349 = vmatpush1.bf16.msra.mxu0 0
      %350 = vmatprep.subr.bf16.mxu0 0
      %351 = vmatpush1.bf16.msra.mxu0 0
      %352 = vmatprep.subr.bf16.mxu0 0
      %353 = vmatpush1.bf16.msra.mxu0 0
      %354 = vmatprep.subr.bf16.mxu0 0
      %355 = vmatpush1.bf16.msra.mxu0 0
      %356 = vmatprep.subr.bf16.mxu0 0
      %357 = vmatpush1.bf16.msra.mxu0 0
      %358 = vmatprep.subr.bf16.mxu0 0
      %359 = vmatpush1.bf16.msra.mxu0 0
      %360 = vmatprep.subr.bf16.mxu0 0
      %361 = vmatpush1.bf16.msra.mxu0 0
      %362 = vmatprep.subr.bf16.mxu0 0
      %363 = vmatpush1.bf16.msra.mxu0 0
      %364 = vmatprep.subr.bf16.mxu0 0
      %365 = vmatpush1.bf16.msra.mxu0 0
      %366 = vmatprep.subr.bf16.mxu0 0
      %367 = vmatpush1.bf16.msra.mxu0 0
      %368 = vmatprep.subr.bf16.mxu0 0
      %369 = vmatpush1.bf16.msra.mxu0 0
      %370 = vmatprep.subr.bf16.mxu0 0
      %371 = vmatpush1.bf16.msra.mxu0 0
      %372 = vmatprep.mubr.bf16.mxu0 0
      %373 = vmatmul.mubr.bf16.gmra.mrb[0].mxu0 %v328
      %v374 = vpop.f32.mrb[0].mxu0
      %v375 = vadd.f32 0.0, %v374
      %v376 = vpop.f32.mrb[0].mxu0
      %v377 = vadd.f32 0.0, %v376
      %v378 = vpop.f32.mrb[0].mxu0
      %v379 = vadd.f32 0.0, %v378
      %v380 = vpop.f32.mrb[0].mxu0
      %v381 = vadd.f32 0.0, %v380
      %382 = vmatprep.mubr.bf16.mxu0 0
      %383 = vmatmul.mubr.bf16.gmra.mrb[0].mxu0 %v331
      %v384 = vpop.f32.mrb[0].mxu0
      %v385 = vadd.f32 0.0, %v384
      %v386 = vpop.f32.mrb[0].mxu0
      %v387 = vadd.f32 0.0, %v386
      %v388 = vpop.f32.mrb[0].mxu0
      %v389 = vpop.f32.mrb[0].mxu0
      %390 = vdwg.mxu0
      %v391 = vmax.f32 %v375, 0.0
      %v392 = vmax.f32 %v377, 0.0
      %v393 = vmax.f32 %v379, 0.0
      %v394 = vmax.f32 %v381, 0.0
      %v395 = vmax.f32 %v385, 0.0
      %v396 = vmax.f32 %v387, 0.0
      %v397 = vpack.c.bf16 %v393, %v391
      %v398 = vpack.c.bf16 %v394, %v392
      %v399 = vpack.c.bf16 %v395, %v395
      %v400 = vpack.c.bf16 %v396, %v396
      %v401 = vlaneseq
      %v402 = vand.u32 %v401, 127
      %v403 = vadd.s32 %v402, 128
      %vm404 = vcmp.lt.s32.totalorder %v402, 0
      %v405 = vsub.s32 0, %v402
      %v406 = vsel %vm404, %v405, %v402
      %v407 = vshrl.u32 %v406, 4
      %v408 = vand.u32 %v406, 15
      %v409 = vsub.s32 0, %v408
      %v410 = vsel %vm404, %v409, %v408
      %vm411 = vcmp.lt.s32.totalorder %v403, 0
      %v412 = vsub.s32 0, %v403
      %v413 = vsel %vm411, %v412, %v403
      %v414 = vshrl.u32 %v413, 4
      %v415 = vand.u32 %v413, 15
      %v416 = vsub.s32 0, %v415
      %v417 = vsel %vm411, %v416, %v415
      %vm418 = vcmp.ne.s32.totalorder %v410, 0
      %vm419 = vcmp.ne.s32.totalorder %v417, 0
      %vm420 = vcmp.lt.s32.totalorder %v410, 0
      %vm421 = vcmp.lt.s32.totalorder %v417, 0
      %vm422 = vmand %vm420, %vm418
      %vm423 = vmand %vm421, %vm419
      %v424 = vadd.s32 %v410, 16
      %v425 = vadd.s32 %v417, 16
      %v426 = vsel %vm422, %v424, %v410
      %v427 = vsel %vm423, %v425, %v417
      %vm428 = vcmp.ge.s32.totalorder %v426, 1
      %vm429 = vcmp.ge.s32.totalorder %v427, 1
      %434 = vrot.lane.b32.xlu0 %v397, 1
      %v435 = vpop.permute.xlu0 %434
      %436 = vrot.lane.b32.xlu0 %v398, 1
      %v437 = vpop.permute.xlu0 %436
      %438 = vrot.lane.b32.xlu0 %v399, 1
      %v439 = vpop.permute.xlu0 %438
      %440 = vrot.lane.b32.xlu0 %v400, 1
      %v441 = vpop.permute.xlu0 %440
      %vm442 = vcmask 7168
      %v443 = vsel %vm442, %v435, %v437
      %v444 = vsel %vm442, %v439, %v441
      %vm447 = vcmask 7168
      %v450 = vsel %vm447, 0, %v435
      %v453 = vsel %vm447, 0, %v439
      %v455 = vsel %vm428, 1, 0
      %v456 = vsel %vm429, 1, 0
      %vm457 = vcmp.eq.s32.totalorder %v455, 1
      %vm458 = vcmp.eq.s32.totalorder %v456, 1
      %vm459 = vmpackc.low %vm458, %vm457
      %v460 = vsel %vm459, 65537, 0
      %v461 = vlaneseq
      %v462 = vshrl.u32 %v461, 7
      %v463 = vsub.s32 0, %v462
      %v464 = vrot.slane %v460, %v463
      %v465 = vlaneseq
      %v466 = vshrl.u32 %v465, 7
      %v467 = vsub.s32 4, %v466
      %v468 = vrot.slane %v460, %v467
      %vm469 = vcmp.ne.s16.totalorder %v464, 0
      %vm470 = vcmp.ne.s16.totalorder %v468, 0
      %v471 = vsel %vm469, %v450, 0
      %v472 = vsel %vm470, %v443, 0
      %v473 = vsel %vm469, %v453, 0
      %v474 = vsel %vm470, %v444, 0
      %vm475 = vcmp.le.s32.totalorder %v426, 14
      %vm476 = vcmp.le.s32.totalorder %v427, 14
      %477 = vrot.lane.b32.xlu0 %v397, 127
      %v478 = vpop.permute.xlu0 %477
      %479 = vrot.lane.b32.xlu0 %v398, 127
      %v480 = vpop.permute.xlu0 %479
      %481 = vrot.lane.b32.xlu0 %v399, 127
      %v482 = vpop.permute.xlu0 %481
      %483 = vrot.lane.b32.xlu0 %v400, 127
      %v484 = vpop.permute.xlu0 %483
      %vm485 = vcmask 1039360
      %v486 = vsel %vm485, %v478, %v480
      %v487 = vsel %vm485, %v482, %v484
      %vm490 = vcmask 1039360
      %v492 = vsel %vm490, %v480, 0
      %v495 = vsel %vm490, %v484, 0
      %v497 = vsel %vm475, 1, 0
      %v498 = vsel %vm476, 1, 0
      %vm499 = vcmp.eq.s32.totalorder %v497, 1
      %vm500 = vcmp.eq.s32.totalorder %v498, 1
      %vm501 = vmpackc.low %vm500, %vm499
      %v502 = vsel %vm501, 65537, 0
      %v503 = vlaneseq
      %v504 = vshrl.u32 %v503, 7
      %v505 = vsub.s32 0, %v504
      %v506 = vrot.slane %v502, %v505
      %v507 = vlaneseq
      %v508 = vshrl.u32 %v507, 7
      %v509 = vsub.s32 4, %v508
      %v510 = vrot.slane %v502, %v509
      %vm511 = vcmp.ne.s16.totalorder %v506, 0
      %vm512 = vcmp.ne.s16.totalorder %v510, 0
      %v513 = vsel %vm511, %v486, 0
      %v514 = vsel %vm512, %v492, 0
      %v515 = vsel %vm511, %v487, 0
      %v516 = vsel %vm512, %v495, 0
      %v517 = vld [vmem:[%s3] sm:$0xf]
      %v518 = vld [vmem:[%s3 + $0x4] sm:$0xf]
      %v519 = vld [vmem:[%s3 + $0x8] sm:$0xf]
      %v520 = vld [vmem:[%s3 + $0xc] sm:$0x3]
      %s521 = scalar_lea.vmem %s3, 16
      %v522 = vld [vmem:[%s521] sm:$0xf]
      %v523 = vld [vmem:[%s521 + $0x4] sm:$0xf]
      %v524 = vld [vmem:[%s521 + $0x8] sm:$0xf]
      %v525 = vld [vmem:[%s521 + $0xc] sm:$0x3]
      %v530 = vunpack.c.l.b16 %v522
      %v531 = vunpack.c.l.b16 %v523
      %v532 = vunpack.c.l.b16 %v524
      %v533 = vunpack.c.l.b16 %v525
      %v534 = vpack.c.b16 %v531, %v530
      %v535 = vpack.c.b16 %v533, %v532
      %vm536 = vcmask 195584
      %v538 = vsel %vm536, %v534, 0
      %v541 = vsel %vm536, %v535, 0
      %vm543 = vcmask 1043456
      %v545 = vsel %vm543, %v399, 0
      %v548 = vsel %vm543, %v400, 0
      %550 = vmatprep.subr.bf16.mxu0 %v398
      %551 = vmatpush1.bf16.msra.mxu0 %v397
      %552 = vmatprep.subr.bf16.mxu0 %v548
      %553 = vmatpush1.bf16.msra.mxu0 %v545
      %554 = vmatprep.subr.bf16.mxu0 0
      %555 = vmatpush1.bf16.msra.mxu0 0
      %556 = vmatprep.subr.bf16.mxu0 0
      %557 = vmatpush1.bf16.msra.mxu0 0
      %558 = vmatprep.subr.bf16.mxu0 0
      %559 = vmatpush1.bf16.msra.mxu0 0
      %560 = vmatprep.subr.bf16.mxu0 0
      %561 = vmatpush1.bf16.msra.mxu0 0
      %562 = vmatprep.subr.bf16.mxu0 0
      %563 = vmatpush1.bf16.msra.mxu0 0
      %564 = vmatprep.subr.bf16.mxu0 0
      %565 = vmatpush1.bf16.msra.mxu0 0
      %566 = vmatprep.subr.bf16.mxu0 0
      %567 = vmatpush1.bf16.msra.mxu0 0
      %568 = vmatprep.subr.bf16.mxu0 0
      %569 = vmatpush1.bf16.msra.mxu0 0
      %570 = vmatprep.subr.bf16.mxu0 0
      %571 = vmatpush1.bf16.msra.mxu0 0
      %572 = vmatprep.subr.bf16.mxu0 0
      %573 = vmatpush1.bf16.msra.mxu0 0
      %574 = vmatprep.subr.bf16.mxu0 0
      %575 = vmatpush1.bf16.msra.mxu0 0
      %576 = vmatprep.subr.bf16.mxu0 0
      %577 = vmatpush1.bf16.msra.mxu0 0
      %578 = vmatprep.subr.bf16.mxu0 0
      %579 = vmatpush1.bf16.msra.mxu0 0
      %580 = vmatprep.subr.bf16.mxu0 0
      %581 = vmatpush1.bf16.msra.mxu0 0
      %582 = vmatprep.mubr.bf16.mxu0 0
      %583 = vmatmul.mubr.bf16.gmra.mrb[0].mxu0 %v538
      %v584 = vpop.f32.mrb[0].mxu0
      %v585 = vadd.f32 0.0, %v584
      %v586 = vpop.f32.mrb[0].mxu0
      %v587 = vadd.f32 0.0, %v586
      %v588 = vpop.f32.mrb[0].mxu0
      %v589 = vadd.f32 0.0, %v588
      %v590 = vpop.f32.mrb[0].mxu0
      %v591 = vadd.f32 0.0, %v590
      %592 = vmatprep.mubr.bf16.mxu0 0
      %593 = vmatmul.mubr.bf16.gmra.mrb[0].mxu0 %v541
      %v594 = vpop.f32.mrb[0].mxu0
      %v595 = vadd.f32 0.0, %v594
      %v596 = vpop.f32.mrb[0].mxu0
      %v597 = vadd.f32 0.0, %v596
      %v598 = vpop.f32.mrb[0].mxu0
      %v599 = vadd.f32 0.0, %v598
      %v600 = vpop.f32.mrb[0].mxu0
      %v601 = vadd.f32 0.0, %v600
      %602 = vdwg.mxu0
      %v607 = vunpack.c.l.b16 %v517
      %v608 = vunpack.c.l.b16 %v518
      %v609 = vunpack.c.l.b16 %v519
      %v610 = vunpack.c.l.b16 %v520
      %v611 = vpack.c.b16 %v608, %v607
      %v612 = vpack.c.b16 %v610, %v609
      %v614 = vsel %vm536, %v611, 0
      %v617 = vsel %vm536, %v612, 0
      %v620 = vsel %vm543, %v473, 0
      %v623 = vsel %vm543, %v474, 0
      %625 = vmatprep.subr.bf16.mxu0 %v472
      %626 = vmatpush1.bf16.msra.mxu0 %v471
      %627 = vmatprep.subr.bf16.mxu0 %v623
      %628 = vmatpush1.bf16.msra.mxu0 %v620
      %629 = vmatprep.subr.bf16.mxu0 0
      %630 = vmatpush1.bf16.msra.mxu0 0
      %631 = vmatprep.subr.bf16.mxu0 0
      %632 = vmatpush1.bf16.msra.mxu0 0
      %633 = vmatprep.subr.bf16.mxu0 0
      %634 = vmatpush1.bf16.msra.mxu0 0
      %635 = vmatprep.subr.bf16.mxu0 0
      %636 = vmatpush1.bf16.msra.mxu0 0
      %637 = vmatprep.subr.bf16.mxu0 0
      %638 = vmatpush1.bf16.msra.mxu0 0
      %639 = vmatprep.subr.bf16.mxu0 0
      %640 = vmatpush1.bf16.msra.mxu0 0
      %641 = vmatprep.subr.bf16.mxu0 0
      %642 = vmatpush1.bf16.msra.mxu0 0
      %643 = vmatprep.subr.bf16.mxu0 0
      %644 = vmatpush1.bf16.msra.mxu0 0
      %645 = vmatprep.subr.bf16.mxu0 0
      %646 = vmatpush1.bf16.msra.mxu0 0
      %647 = vmatprep.subr.bf16.mxu0 0
      %648 = vmatpush1.bf16.msra.mxu0 0
      %649 = vmatprep.subr.bf16.mxu0 0
      %650 = vmatpush1.bf16.msra.mxu0 0
      %651 = vmatprep.subr.bf16.mxu0 0
      %652 = vmatpush1.bf16.msra.mxu0 0
      %653 = vmatprep.subr.bf16.mxu0 0
      %654 = vmatpush1.bf16.msra.mxu0 0
      %655 = vmatprep.subr.bf16.mxu0 0
      %656 = vmatpush1.bf16.msra.mxu0 0
      %657 = vmatprep.mubr.bf16.mxu0 0
      %658 = vmatmul.mubr.bf16.gmra.mrb[0].mxu0 %v614
      %v659 = vpop.f32.mrb[0].mxu0
      %v660 = vadd.f32 %v585, %v659
      %v661 = vpop.f32.mrb[0].mxu0
      %v662 = vadd.f32 %v587, %v661
      %v663 = vpop.f32.mrb[0].mxu0
      %v664 = vadd.f32 %v589, %v663
      %v665 = vpop.f32.mrb[0].mxu0
      %v666 = vadd.f32 %v591, %v665
      %667 = vmatprep.mubr.bf16.mxu0 0
      %668 = vmatmul.mubr.bf16.gmra.mrb[0].mxu0 %v617
      %v669 = vpop.f32.mrb[0].mxu0
      %v670 = vadd.f32 %v595, %v669
      %v671 = vpop.f32.mrb[0].mxu0
      %v672 = vadd.f32 %v597, %v671
      %v673 = vpop.f32.mrb[0].mxu0
      %v674 = vadd.f32 %v599, %v673
      %v675 = vpop.f32.mrb[0].mxu0
      %v676 = vadd.f32 %v601, %v675
      %677 = vdwg.mxu0
      %s678 = scalar_lea.vmem %s3, 32
      %v679 = vld [vmem:[%s678] sm:$0xf]
      %v680 = vld [vmem:[%s678 + $0x4] sm:$0xf]
      %v681 = vld [vmem:[%s678 + $0x8] sm:$0xf]
      %v682 = vld [vmem:[%s678 + $0xc] sm:$0x3]
      %v687 = vunpack.c.l.b16 %v679
      %v688 = vunpack.c.l.b16 %v680
      %v689 = vunpack.c.l.b16 %v681
      %v690 = vunpack.c.l.b16 %v682
      %v691 = vpack.c.b16 %v688, %v687
      %v692 = vpack.c.b16 %v690, %v689
      %v694 = vsel %vm536, %v691, 0
      %v697 = vsel %vm536, %v692, 0
      %v700 = vsel %vm543, %v515, 0
      %v703 = vsel %vm543, %v516, 0
      %705 = vmatprep.subr.bf16.mxu0 %v514
      %706 = vmatpush1.bf16.msra.mxu0 %v513
      %707 = vmatprep.subr.bf16.mxu0 %v703
      %708 = vmatpush1.bf16.msra.mxu0 %v700
      %709 = vmatprep.subr.bf16.mxu0 0
      %710 = vmatpush1.bf16.msra.mxu0 0
      %711 = vmatprep.subr.bf16.mxu0 0
      %712 = vmatpush1.bf16.msra.mxu0 0
      %713 = vmatprep.subr.bf16.mxu0 0
      %714 = vmatpush1.bf16.msra.mxu0 0
      %715 = vmatprep.subr.bf16.mxu0 0
      %716 = vmatpush1.bf16.msra.mxu0 0
      %717 = vmatprep.subr.bf16.mxu0 0
      %718 = vmatpush1.bf16.msra.mxu0 0
      %719 = vmatprep.subr.bf16.mxu0 0
      %720 = vmatpush1.bf16.msra.mxu0 0
      %721 = vmatprep.subr.bf16.mxu0 0
      %722 = vmatpush1.bf16.msra.mxu0 0
      %723 = vmatprep.subr.bf16.mxu0 0
      %724 = vmatpush1.bf16.msra.mxu0 0
      %725 = vmatprep.subr.bf16.mxu0 0
      %726 = vmatpush1.bf16.msra.mxu0 0
      %727 = vmatprep.subr.bf16.mxu0 0
      %728 = vmatpush1.bf16.msra.mxu0 0
      %729 = vmatprep.subr.bf16.mxu0 0
      %730 = vmatpush1.bf16.msra.mxu0 0
      %731 = vmatprep.subr.bf16.mxu0 0
      %732 = vmatpush1.bf16.msra.mxu0 0
      %733 = vmatprep.subr.bf16.mxu0 0
      %734 = vmatpush1.bf16.msra.mxu0 0
      %735 = vmatprep.subr.bf16.mxu0 0
      %736 = vmatpush1.bf16.msra.mxu0 0
      %737 = vmatprep.mubr.bf16.mxu0 0
      %738 = vmatmul.mubr.bf16.gmra.mrb[0].mxu0 %v694
      %v739 = vpop.f32.mrb[0].mxu0
      %v740 = vadd.f32 0.0, %v739
      %v741 = vpop.f32.mrb[0].mxu0
      %v742 = vadd.f32 0.0, %v741
      %v743 = vpop.f32.mrb[0].mxu0
      %v744 = vadd.f32 0.0, %v743
      %v745 = vpop.f32.mrb[0].mxu0
      %v746 = vadd.f32 0.0, %v745
      %747 = vmatprep.mubr.bf16.mxu0 0
      %748 = vmatmul.mubr.bf16.gmra.mrb[0].mxu0 %v697
      %v749 = vpop.f32.mrb[0].mxu0
      %v750 = vadd.f32 0.0, %v749
      %v751 = vpop.f32.mrb[0].mxu0
      %v752 = vadd.f32 0.0, %v751
      %v753 = vpop.f32.mrb[0].mxu0
      %v754 = vadd.f32 0.0, %v753
      %v755 = vpop.f32.mrb[0].mxu0
      %v756 = vadd.f32 0.0, %v755
      %757 = vdwg.mxu0
      %v758 = vadd.f32 %v660, %v740
      %v759 = vadd.f32 %v662, %v742
      %v760 = vadd.f32 %v664, %v744
      %v761 = vadd.f32 %v666, %v746
      %v762 = vadd.f32 %v670, %v750
      %v763 = vadd.f32 %v672, %v752
      %v764 = vadd.f32 %v674, %v754
      %v765 = vadd.f32 %v676, %v756
      %v766 = vmax.f32 %v758, 0.0
      %v767 = vmax.f32 %v759, 0.0
      %v768 = vmax.f32 %v760, 0.0
      %v769 = vmax.f32 %v761, 0.0
      %v770 = vmax.f32 %v762, 0.0
      %v771 = vmax.f32 %v763, 0.0
      %v772 = vmax.f32 %v764, 0.0
      %v773 = vmax.f32 %v765, 0.0
      %v774 = vpack.c.bf16 %v768, %v766
      %v775 = vpack.c.bf16 %v769, %v767
      %v776 = vpack.c.bf16 %v772, %v770
      %v777 = vpack.c.bf16 %v773, %v771
      %782 = vrot.lane.b32.xlu0 %v774, 16
      %v783 = vpop.permute.xlu0 %782
      %784 = vrot.lane.b32.xlu0 %v775, 16
      %v785 = vpop.permute.xlu0 %784
      %786 = vrot.lane.b32.xlu0 %v776, 16
      %v787 = vpop.permute.xlu0 %786
      %788 = vrot.lane.b32.xlu0 %v777, 16
      %v789 = vpop.permute.xlu0 %788
      %vm790 = vcmask 130048
      %v791 = vsel %vm790, %v783, %v785
      %v792 = vsel %vm790, %v787, %v789
      %vm794 = vcmask 130048
      %v796 = vsel %vm794, 0, %v783
      %v799 = vsel %vm794, 0, %v787
      %800 = vrot.lane.b32.xlu0 %v774, 112
      %v801 = vpop.permute.xlu0 %800
      %802 = vrot.lane.b32.xlu0 %v775, 112
      %v803 = vpop.permute.xlu0 %802
      %804 = vrot.lane.b32.xlu0 %v776, 112
      %v805 = vpop.permute.xlu0 %804
      %806 = vrot.lane.b32.xlu0 %v777, 112
      %v807 = vpop.permute.xlu0 %806
      %vm808 = vcmask 916480
      %v809 = vsel %vm808, %v801, %v803
      %v810 = vsel %vm808, %v805, %v807
      %vm812 = vcmask 916480
      %v814 = vsel %vm812, %v803, 0
      %v817 = vsel %vm812, %v807, 0
      %v818 = vld [vmem:[%s4] sm:$0xf]
      %v819 = vld [vmem:[%s4 + $0x4] sm:$0xf]
      %v820 = vld [vmem:[%s4 + $0x8] sm:$0xf]
      %v821 = vld [vmem:[%s4 + $0xc] sm:$0xf]
      %s822 = scalar_lea.vmem %s4, 16
      %v823 = vld [vmem:[%s822] sm:$0xf]
      %v824 = vld [vmem:[%s822 + $0x4] sm:$0xf]
      %v825 = vld [vmem:[%s822 + $0x8] sm:$0xf]
      %v826 = vld [vmem:[%s822 + $0xc] sm:$0xf]
      %v831 = vunpack.c.l.b16 %v823
      %v832 = vunpack.c.l.b16 %v824
      %v833 = vunpack.c.l.b16 %v825
      %v834 = vunpack.c.l.b16 %v826
      %v835 = vpack.c.b16 %v832, %v831
      %v836 = vpack.c.b16 %v834, %v833
      %vm837 = vcmask 228352
      %v839 = vsel %vm837, %v835, 0
      %v842 = vsel %vm837, %v836, 0
      %vm844 = vcmask 1045504
      %v846 = vsel %vm844, %v776, 0
      %v849 = vsel %vm844, %v777, 0
      %851 = vmatprep.subr.bf16.mxu0 %v775
      %852 = vmatpush1.bf16.msra.mxu0 %v774
      %853 = vmatprep.subr.bf16.mxu0 %v849
      %854 = vmatpush1.bf16.msra.mxu0 %v846
      %855 = vmatprep.subr.bf16.mxu0 0
      %856 = vmatpush1.bf16.msra.mxu0 0
      %857 = vmatprep.subr.bf16.mxu0 0
      %858 = vmatpush1.bf16.msra.mxu0 0
      %859 = vmatprep.subr.bf16.mxu0 0
      %860 = vmatpush1.bf16.msra.mxu0 0
      %861 = vmatprep.subr.bf16.mxu0 0
      %862 = vmatpush1.bf16.msra.mxu0 0
      %863 = vmatprep.subr.bf16.mxu0 0
      %864 = vmatpush1.bf16.msra.mxu0 0
      %865 = vmatprep.subr.bf16.mxu0 0
      %866 = vmatpush1.bf16.msra.mxu0 0
      %867 = vmatprep.subr.bf16.mxu0 0
      %868 = vmatpush1.bf16.msra.mxu0 0
      %869 = vmatprep.subr.bf16.mxu0 0
      %870 = vmatpush1.bf16.msra.mxu0 0
      %871 = vmatprep.subr.bf16.mxu0 0
      %872 = vmatpush1.bf16.msra.mxu0 0
      %873 = vmatprep.subr.bf16.mxu0 0
      %874 = vmatpush1.bf16.msra.mxu0 0
      %875 = vmatprep.subr.bf16.mxu0 0
      %876 = vmatpush1.bf16.msra.mxu0 0
      %877 = vmatprep.subr.bf16.mxu0 0
      %878 = vmatpush1.bf16.msra.mxu0 0
      %879 = vmatprep.subr.bf16.mxu0 0
      %880 = vmatpush1.bf16.msra.mxu0 0
      %881 = vmatprep.subr.bf16.mxu0 0
      %882 = vmatpush1.bf16.msra.mxu0 0
      %883 = vmatprep.mubr.bf16.mxu0 0
      %884 = vmatmul.mubr.bf16.gmra.mrb[0].mxu0 %v839
      %v885 = vpop.f32.mrb[0].mxu0
      %v886 = vadd.f32 0.0, %v885
      %v887 = vpop.f32.mrb[0].mxu0
      %v888 = vadd.f32 0.0, %v887
      %v889 = vpop.f32.mrb[0].mxu0
      %v890 = vadd.f32 0.0, %v889
      %v891 = vpop.f32.mrb[0].mxu0
      %v892 = vadd.f32 0.0, %v891
      %893 = vmatprep.mubr.bf16.mxu0 0
      %894 = vmatmul.mubr.bf16.gmra.mrb[0].mxu0 %v842
      %v895 = vpop.f32.mrb[0].mxu0
      %v896 = vadd.f32 0.0, %v895
      %v897 = vpop.f32.mrb[0].mxu0
      %v898 = vadd.f32 0.0, %v897
      %v899 = vpop.f32.mrb[0].mxu0
      %v900 = vadd.f32 0.0, %v899
      %v901 = vpop.f32.mrb[0].mxu0
      %v902 = vadd.f32 0.0, %v901
      %903 = vdwg.mxu0
      %v908 = vunpack.c.l.b16 %v818
      %v909 = vunpack.c.l.b16 %v819
      %v910 = vunpack.c.l.b16 %v820
      %v911 = vunpack.c.l.b16 %v821
      %v912 = vpack.c.b16 %v909, %v908
      %v913 = vpack.c.b16 %v911, %v910
      %v915 = vsel %vm837, %v912, 0
      %v918 = vsel %vm837, %v913, 0
      %v920 = vsel %vm844, %v799, 0
      %v923 = vsel %vm844, %v792, 0
      %925 = vmatprep.subr.bf16.mxu0 %v791
      %926 = vmatpush1.bf16.msra.mxu0 %v796
      %927 = vmatprep.subr.bf16.mxu0 %v923
      %928 = vmatpush1.bf16.msra.mxu0 %v920
      %929 = vmatprep.subr.bf16.mxu0 0
      %930 = vmatpush1.bf16.msra.mxu0 0
      %931 = vmatprep.subr.bf16.mxu0 0
      %932 = vmatpush1.bf16.msra.mxu0 0
      %933 = vmatprep.subr.bf16.mxu0 0
      %934 = vmatpush1.bf16.msra.mxu0 0
      %935 = vmatprep.subr.bf16.mxu0 0
      %936 = vmatpush1.bf16.msra.mxu0 0
      %937 = vmatprep.subr.bf16.mxu0 0
      %938 = vmatpush1.bf16.msra.mxu0 0
      %939 = vmatprep.subr.bf16.mxu0 0
      %940 = vmatpush1.bf16.msra.mxu0 0
      %941 = vmatprep.subr.bf16.mxu0 0
      %942 = vmatpush1.bf16.msra.mxu0 0
      %943 = vmatprep.subr.bf16.mxu0 0
      %944 = vmatpush1.bf16.msra.mxu0 0
      %945 = vmatprep.subr.bf16.mxu0 0
      %946 = vmatpush1.bf16.msra.mxu0 0
      %947 = vmatprep.subr.bf16.mxu0 0
      %948 = vmatpush1.bf16.msra.mxu0 0
      %949 = vmatprep.subr.bf16.mxu0 0
      %950 = vmatpush1.bf16.msra.mxu0 0
      %951 = vmatprep.subr.bf16.mxu0 0
      %952 = vmatpush1.bf16.msra.mxu0 0
      %953 = vmatprep.subr.bf16.mxu0 0
      %954 = vmatpush1.bf16.msra.mxu0 0
      %955 = vmatprep.subr.bf16.mxu0 0
      %956 = vmatpush1.bf16.msra.mxu0 0
      %957 = vmatprep.mubr.bf16.mxu0 0
      %958 = vmatmul.mubr.bf16.gmra.mrb[0].mxu0 %v915
      %v959 = vpop.f32.mrb[0].mxu0
      %v960 = vadd.f32 %v886, %v959
      %v961 = vpop.f32.mrb[0].mxu0
      %v962 = vadd.f32 %v888, %v961
      %v963 = vpop.f32.mrb[0].mxu0
      %v964 = vadd.f32 %v890, %v963
      %v965 = vpop.f32.mrb[0].mxu0
      %v966 = vadd.f32 %v892, %v965
      %967 = vmatprep.mubr.bf16.mxu0 0
      %968 = vmatmul.mubr.bf16.gmra.mrb[0].mxu0 %v918
      %v969 = vpop.f32.mrb[0].mxu0
      %v970 = vadd.f32 %v896, %v969
      %v971 = vpop.f32.mrb[0].mxu0
      %v972 = vadd.f32 %v898, %v971
      %v973 = vpop.f32.mrb[0].mxu0
      %v974 = vadd.f32 %v900, %v973
      %v975 = vpop.f32.mrb[0].mxu0
      %v976 = vadd.f32 %v902, %v975
      %977 = vdwg.mxu0
      %s978 = scalar_lea.vmem %s4, 32
      %v979 = vld [vmem:[%s978] sm:$0xf]
      %v980 = vld [vmem:[%s978 + $0x4] sm:$0xf]
      %v981 = vld [vmem:[%s978 + $0x8] sm:$0xf]
      %v982 = vld [vmem:[%s978 + $0xc] sm:$0xf]
      %v987 = vunpack.c.l.b16 %v979
      %v988 = vunpack.c.l.b16 %v980
      %v989 = vunpack.c.l.b16 %v981
      %v990 = vunpack.c.l.b16 %v982
      %v991 = vpack.c.b16 %v988, %v987
      %v992 = vpack.c.b16 %v990, %v989
      %v994 = vsel %vm837, %v991, 0
      %v997 = vsel %vm837, %v992, 0
      %v1000 = vsel %vm844, %v810, 0
      %v1002 = vsel %vm844, %v817, 0
      %1004 = vmatprep.subr.bf16.mxu0 %v814
      %1005 = vmatpush1.bf16.msra.mxu0 %v809
      %1006 = vmatprep.subr.bf16.mxu0 %v1002
      %1007 = vmatpush1.bf16.msra.mxu0 %v1000
      %1008 = vmatprep.subr.bf16.mxu0 0
      %1009 = vmatpush1.bf16.msra.mxu0 0
      %1010 = vmatprep.subr.bf16.mxu0 0
      %1011 = vmatpush1.bf16.msra.mxu0 0
      %1012 = vmatprep.subr.bf16.mxu0 0
      %1013 = vmatpush1.bf16.msra.mxu0 0
      %1014 = vmatprep.subr.bf16.mxu0 0
      %1015 = vmatpush1.bf16.msra.mxu0 0
      %1016 = vmatprep.subr.bf16.mxu0 0
      %1017 = vmatpush1.bf16.msra.mxu0 0
      %1018 = vmatprep.subr.bf16.mxu0 0
      %1019 = vmatpush1.bf16.msra.mxu0 0
      %1020 = vmatprep.subr.bf16.mxu0 0
      %1021 = vmatpush1.bf16.msra.mxu0 0
      %1022 = vmatprep.subr.bf16.mxu0 0
      %1023 = vmatpush1.bf16.msra.mxu0 0
      %1024 = vmatprep.subr.bf16.mxu0 0
      %1025 = vmatpush1.bf16.msra.mxu0 0
      %1026 = vmatprep.subr.bf16.mxu0 0
      %1027 = vmatpush1.bf16.msra.mxu0 0
      %1028 = vmatprep.subr.bf16.mxu0 0
      %1029 = vmatpush1.bf16.msra.mxu0 0
      %1030 = vmatprep.subr.bf16.mxu0 0
      %1031 = vmatpush1.bf16.msra.mxu0 0
      %1032 = vmatprep.subr.bf16.mxu0 0
      %1033 = vmatpush1.bf16.msra.mxu0 0
      %1034 = vmatprep.subr.bf16.mxu0 0
      %1035 = vmatpush1.bf16.msra.mxu0 0
      %1036 = vmatprep.mubr.bf16.mxu0 0
      %1037 = vmatmul.mubr.bf16.gmra.mrb[0].mxu0 %v994
      %v1038 = vpop.f32.mrb[0].mxu0
      %v1039 = vadd.f32 0.0, %v1038
      %v1040 = vpop.f32.mrb[0].mxu0
      %v1041 = vadd.f32 0.0, %v1040
      %v1042 = vpop.f32.mrb[0].mxu0
      %v1043 = vadd.f32 0.0, %v1042
      %v1044 = vpop.f32.mrb[0].mxu0
      %v1045 = vadd.f32 0.0, %v1044
      %1046 = vmatprep.mubr.bf16.mxu0 0
      %1047 = vmatmul.mubr.bf16.gmra.mrb[0].mxu0 %v997
      %v1048 = vpop.f32.mrb[0].mxu0
      %v1049 = vadd.f32 0.0, %v1048
      %v1050 = vpop.f32.mrb[0].mxu0
      %v1051 = vadd.f32 0.0, %v1050
      %v1052 = vpop.f32.mrb[0].mxu0
      %v1053 = vadd.f32 0.0, %v1052
      %v1054 = vpop.f32.mrb[0].mxu0
      %v1055 = vadd.f32 0.0, %v1054
      %1056 = vdwg.mxu0
      %v1057 = vadd.f32 %v960, %v1039
      %v1058 = vadd.f32 %v962, %v1041
      %v1059 = vadd.f32 %v964, %v1043
      %v1060 = vadd.f32 %v966, %v1045
      %v1061 = vadd.f32 %v970, %v1049
      %v1062 = vadd.f32 %v972, %v1051
      %v1063 = vadd.f32 %v974, %v1053
      %v1064 = vadd.f32 %v976, %v1055
      %v1065 = vmax.f32 %v1057, 0.0
      %v1066 = vmax.f32 %v1058, 0.0
      %v1067 = vmax.f32 %v1059, 0.0
      %v1068 = vmax.f32 %v1060, 0.0
      %v1069 = vmax.f32 %v1061, 0.0
      %v1070 = vmax.f32 %v1062, 0.0
      %v1071 = vmax.f32 %v1063, 0.0
      %v1072 = vmax.f32 %v1064, 0.0
      %v1073 = vpack.c.bf16 %v1067, %v1065
      %v1074 = vpack.c.bf16 %v1068, %v1066
      %v1075 = vpack.c.bf16 %v1071, %v1069
      %v1076 = vpack.c.bf16 %v1072, %v1070
      %v1077 = vld [vmem:[%s1] sm:$0xf]
      %v1078 = vld [vmem:[%s1 + $0x4] sm:$0xf]
      %v1079 = vld [vmem:[%s1 + $0x8] sm:$0xf]
      %v1083 = vunpack.c.l.b16 %v1077
      %v1084 = vunpack.c.l.b16 %v1078
      %v1085 = vunpack.c.l.b16 %v1079
      %v1086 = vpack.c.b16 %v1084, %v1083
      %v1087 = vpack.c.b16 %v1085, %v1085
      %v1089 = vsel %vm326, %v1086, 0
      %v1092 = vsel %vm326, %v1087, 0
      %1094 = vmatprep.subr.bf16.mxu0 %v338
      %1095 = vmatpush1.bf16.msra.mxu0 %v335
      %1096 = vmatprep.subr.bf16.mxu0 0
      %1097 = vmatpush1.bf16.msra.mxu0 0
      %1098 = vmatprep.subr.bf16.mxu0 0
      %1099 = vmatpush1.bf16.msra.mxu0 0
      %1100 = vmatprep.subr.bf16.mxu0 0
      %1101 = vmatpush1.bf16.msra.mxu0 0
      %1102 = vmatprep.subr.bf16.mxu0 0
      %1103 = vmatpush1.bf16.msra.mxu0 0
      %1104 = vmatprep.subr.bf16.mxu0 0
      %1105 = vmatpush1.bf16.msra.mxu0 0
      %1106 = vmatprep.subr.bf16.mxu0 0
      %1107 = vmatpush1.bf16.msra.mxu0 0
      %1108 = vmatprep.subr.bf16.mxu0 0
      %1109 = vmatpush1.bf16.msra.mxu0 0
      %1110 = vmatprep.subr.bf16.mxu0 0
      %1111 = vmatpush1.bf16.msra.mxu0 0
      %1112 = vmatprep.subr.bf16.mxu0 0
      %1113 = vmatpush1.bf16.msra.mxu0 0
      %1114 = vmatprep.subr.bf16.mxu0 0
      %1115 = vmatpush1.bf16.msra.mxu0 0
      %1116 = vmatprep.subr.bf16.mxu0 0
      %1117 = vmatpush1.bf16.msra.mxu0 0
      %1118 = vmatprep.subr.bf16.mxu0 0
      %1119 = vmatpush1.bf16.msra.mxu0 0
      %1120 = vmatprep.subr.bf16.mxu0 0
      %1121 = vmatpush1.bf16.msra.mxu0 0
      %1122 = vmatprep.subr.bf16.mxu0 0
      %1123 = vmatpush1.bf16.msra.mxu0 0
      %1124 = vmatprep.subr.bf16.mxu0 0
      %1125 = vmatpush1.bf16.msra.mxu0 0
      %1126 = vmatprep.mubr.bf16.mxu0 0
      %1127 = vmatmul.mubr.bf16.gmra.mrb[0].mxu0 %v1089
      %v1128 = vpop.f32.mrb[0].mxu0
      %v1129 = vadd.f32 0.0, %v1128
      %v1130 = vpop.f32.mrb[0].mxu0
      %v1131 = vadd.f32 0.0, %v1130
      %v1132 = vpop.f32.mrb[0].mxu0
      %v1133 = vadd.f32 0.0, %v1132
      %v1134 = vpop.f32.mrb[0].mxu0
      %v1135 = vadd.f32 0.0, %v1134
      %1136 = vmatprep.mubr.bf16.mxu0 0
      %1137 = vmatmul.mubr.bf16.gmra.mrb[0].mxu0 %v1092
      %v1138 = vpop.f32.mrb[0].mxu0
      %v1139 = vadd.f32 0.0, %v1138
      %v1140 = vpop.f32.mrb[0].mxu0
      %v1141 = vadd.f32 0.0, %v1140
      %v1142 = vpop.f32.mrb[0].mxu0
      %v1143 = vpop.f32.mrb[0].mxu0
      %1144 = vdwg.mxu0
      %v1145 = vmax.f32 %v1129, 0.0
      %v1146 = vmax.f32 %v1131, 0.0
      %v1147 = vmax.f32 %v1133, 0.0
      %v1148 = vmax.f32 %v1135, 0.0
      %v1149 = vmax.f32 %v1139, 0.0
      %v1150 = vmax.f32 %v1141, 0.0
      %v1151 = vpack.c.bf16 %v1147, %v1145
      %v1152 = vpack.c.bf16 %v1148, %v1146
      %v1153 = vpack.c.bf16 %v1149, %v1149
      %v1154 = vpack.c.bf16 %v1150, %v1150
      %v1155 = vld [vmem:[%s5] sm:$0x3]
      %v1156 = vld [vmem:[%s6] sm:$0x3]
      %vm1157 = vcmask 261120
      %v1159 = vsel %vm1157, %v1156, 0
      %1161 = vmatprep.subr.bf16.mxu0 %v1074
      %1162 = vmatpush1.bf16.msra.mxu0 %v1073
      %1163 = vmatprep.subr.bf16.mxu0 %v1076
      %1164 = vmatpush1.bf16.msra.mxu0 %v1075
      %1165 = vmatprep.subr.bf16.mxu0 0
      %1166 = vmatpush1.bf16.msra.mxu0 0
      %1167 = vmatprep.subr.bf16.mxu0 0
      %1168 = vmatpush1.bf16.msra.mxu0 0
      %1169 = vmatprep.subr.bf16.mxu0 0
      %1170 = vmatpush1.bf16.msra.mxu0 0
      %1171 = vmatprep.subr.bf16.mxu0 0
      %1172 = vmatpush1.bf16.msra.mxu0 0
      %1173 = vmatprep.subr.bf16.mxu0 0
      %1174 = vmatpush1.bf16.msra.mxu0 0
      %1175 = vmatprep.subr.bf16.mxu0 0
      %1176 = vmatpush1.bf16.msra.mxu0 0
      %1177 = vmatprep.subr.bf16.mxu0 0
      %1178 = vmatpush1.bf16.msra.mxu0 0
      %1179 = vmatprep.subr.bf16.mxu0 0
      %1180 = vmatpush1.bf16.msra.mxu0 0
      %1181 = vmatprep.subr.bf16.mxu0 0
      %1182 = vmatpush1.bf16.msra.mxu0 0
      %1183 = vmatprep.subr.bf16.mxu0 0
      %1184 = vmatpush1.bf16.msra.mxu0 0
      %1185 = vmatprep.subr.bf16.mxu0 0
      %1186 = vmatpush1.bf16.msra.mxu0 0
      %1187 = vmatprep.subr.bf16.mxu0 0
      %1188 = vmatpush1.bf16.msra.mxu0 0
      %1189 = vmatprep.subr.bf16.mxu0 0
      %1190 = vmatpush1.bf16.msra.mxu0 0
      %1191 = vmatprep.subr.bf16.mxu0 0
      %1192 = vmatpush1.bf16.msra.mxu0 0
      %1193 = vmatprep.mubr.bf16.mxu0 0
      %1194 = vmatmul.mubr.bf16.gmra.mrb[0].mxu0 %v1159
      %v1195 = vpop.f32.mrb[0].mxu0
      %v1196 = vadd.f32 0.0, %v1195
      %v1197 = vpop.f32.mrb[0].mxu0
      %v1198 = vadd.f32 0.0, %v1197
      %v1199 = vpop.f32.mrb[0].mxu0
      %v1200 = vpop.f32.mrb[0].mxu0
      %1201 = vdwg.mxu0
      %v1203 = vsel %vm536, %v1155, 0
      %v1206 = vsel %vm543, %v1153, 0
      %v1209 = vsel %vm543, %v1154, 0
      %1211 = vmatprep.subr.bf16.mxu0 %v1152
      %1212 = vmatpush1.bf16.msra.mxu0 %v1151
      %1213 = vmatprep.subr.bf16.mxu0 %v1209
      %1214 = vmatpush1.bf16.msra.mxu0 %v1206
      %1215 = vmatprep.subr.bf16.mxu0 0
      %1216 = vmatpush1.bf16.msra.mxu0 0
      %1217 = vmatprep.subr.bf16.mxu0 0
      %1218 = vmatpush1.bf16.msra.mxu0 0
      %1219 = vmatprep.subr.bf16.mxu0 0
      %1220 = vmatpush1.bf16.msra.mxu0 0
      %1221 = vmatprep.subr.bf16.mxu0 0
      %1222 = vmatpush1.bf16.msra.mxu0 0
      %1223 = vmatprep.subr.bf16.mxu0 0
      %1224 = vmatpush1.bf16.msra.mxu0 0
      %1225 = vmatprep.subr.bf16.mxu0 0
      %1226 = vmatpush1.bf16.msra.mxu0 0
      %1227 = vmatprep.subr.bf16.mxu0 0
      %1228 = vmatpush1.bf16.msra.mxu0 0
      %1229 = vmatprep.subr.bf16.mxu0 0
      %1230 = vmatpush1.bf16.msra.mxu0 0
      %1231 = vmatprep.subr.bf16.mxu0 0
      %1232 = vmatpush1.bf16.msra.mxu0 0
      %1233 = vmatprep.subr.bf16.mxu0 0
      %1234 = vmatpush1.bf16.msra.mxu0 0
      %1235 = vmatprep.subr.bf16.mxu0 0
      %1236 = vmatpush1.bf16.msra.mxu0 0
      %1237 = vmatprep.subr.bf16.mxu0 0
      %1238 = vmatpush1.bf16.msra.mxu0 0
      %1239 = vmatprep.subr.bf16.mxu0 0
      %1240 = vmatpush1.bf16.msra.mxu0 0
      %1241 = vmatprep.subr.bf16.mxu0 0
      %1242 = vmatpush1.bf16.msra.mxu0 0
      %1243 = vmatprep.mubr.bf16.mxu0 0
      %1244 = vmatmul.mubr.bf16.gmra.mrb[0].mxu0 %v1203
      %v1245 = vpop.f32.mrb[0].mxu0
      %v1246 = vadd.f32 %v1196, %v1245
      %v1247 = vpop.f32.mrb[0].mxu0
      %v1248 = vadd.f32 %v1198, %v1247
      %v1249 = vpop.f32.mrb[0].mxu0
      %v1250 = vpop.f32.mrb[0].mxu0
      %1251 = vdwg.mxu0
      %v1252 = vld [vmem:[%s7] sm:$0xf]
      %1254 = vset.pattern.permute.xlu0 0
      %1255 = vperm.xlu0 %1254, %v1252
      %v1256 = vpop.permute.xlu0 %1255
      %v1258 = vadd.f32 %v1246, %v1256
      %v1259 = vadd.f32 %v1248, %v1256
      %v1262 = vcombine.low %v1258, %v1259
      %v1264 = vadd.f32 %v309, %v1262
      %v1265 = vmax.f32 %v1264, 0.0
      %1266 = vst [vmem:[%s305] sm:$0xff] %v1265
      %p1267 = scmp.lt.s32.totalorder %s19, 1
      %s1268 = scalar_select %p1267, %s19, 1
      %s1269 = smul.addr %s1268, 2
      %s1270 = smul.addr %s1269, 4
      %s1271 = scalar_lea.vmem %s8, %s1270
      // Predicated region
      $region53: #{module_c_forward.1} parent=51 // pred_check
        %p1272 = pneg %p210
      $region54: #{module_c_forward.1} parent=51 // pred_check_branch
        %1274 = sbr.rel (%p1272) target = $region56
      $region55: #{module_c_forward.1} parent=51 // pred_region
        _
      $region56: #{module_c_forward.1} parent=51 // pred_fallthru
        _
    $region52: #{module_c_forward.1} parent=5 // pred_fallthru
      _
    %p1275 = scmp.le.s32.totalorder 2, %s14
    // Predicated region
    $region57: #{module_c_forward.1} parent=5 // pred_check
      %p1276 = pneg %p1275
    $region58: #{module_c_forward.1} parent=5 // pred_check_branch
      %1278 = sbr.rel (%p1276) target = $region60
    $region59: #{module_c_forward.1} parent=5 // pred_region
      %s1279 = ssub.s32 %s14, 2
      // Predicated region
      $region61: #{module_c_forward.1} parent=59 // pred_check
        %p1280 = pneg %p216
      $region62: #{module_c_forward.1} parent=59 // pred_check_branch
        %1282 = sbr.rel (%p1280) target = $region64
      $region63: #{module_c_forward.1} parent=59 // pred_region
        %p1283 = scmp.lt.s32.totalorder %s20, 1
        %s1284 = scalar_select %p1283, %s20, 1
        %s1285 = smul.addr %s1284, 2
        %s1286 = smul.addr %s1285, 4
        %s1287 = scalar_lea.vmem %s8, %s1286
      $region64: #{module_c_forward.1} parent=59 // pred_fallthru
        _
    $region60: #{module_c_forward.1} parent=5 // pred_fallthru
      _
  $region6: #{module_c_forward.1} parent=0 // loop_footer
    %s18 = sadd.s32 1, %s14
  $region7: #{module_c_forward.1} parent=0 // loop_footer_branch
    %13 = sbr.rel target = $region3
  $region8: #{module_c_forward.1} parent=0 // loop_exit
    _

</llo_original>
